<compile_context>
chip_gen: v5e
topology: v5e:2x2
jax: 0.10.0
libtpu: 0.0.40
codegen_flags: <defaults>
</compile_context>

<pallas_src>
import functools
import math

import numpy as np
import jax
import jax.numpy as jnp
from jax.experimental import pallas as pl
from jax.experimental.pallas import tpu as pltpu


def _round_up(x, m):
    return (x + m - 1) // m * m


# ----------------------------- kernel ----------------------------------------

def _refinement_block_kernel(x_ref, w1t_ref, b1_ref, w9t1_ref, sh1_ref,
                             w9t2_ref, sh2_ref, m1_ref, m2_ref,
                             o_ref, slab_ref, *, W, HW, Cpad, cdt):
    f32 = jnp.float32
    Cout = o_ref.shape[0]

    # ---- initial = ReLU(W1^T @ x + b1)   (1x1 conv, bias, no BN) ----
    init = jnp.maximum(
        jnp.dot(w1t_ref[...], x_ref[...], preferred_element_type=f32)
        + b1_ref[...], 0.0)                                   # (Cpad, HW) f32
    # Park the residual in the (VMEM-resident) output block immediately.
    o_ref[...] = init[:Cout, :].astype(o_ref.dtype)

    def conv3x3(feat, w9t_ref, sh_ref, m_ref, d):
        # feat: (Cpad, HW) compute-dtype slab, pixels flattened on the lanes.
        # Tap t = ky*3+kx: a static lane rotation (XLU) + one 0/1 mask multiply
        # (zeroes out-of-bounds / row-wrapped reads), stored at a sublane-
        # aligned offset of the im2col scratch.  Then ONE matmul, K = 9*Cpad.
        for ky in range(3):
            for kx in range(3):
                t = ky * 3 + kx
                s = ((ky - 1) * W + (kx - 1)) * d             # flat tap offset
                tap = feat if s == 0 else pltpu.roll(feat, (-s) % HW, axis=1)
                if not (ky == 1 and kx == 1):
                    tap = tap * m_ref[t:t + 1, :]             # (1, HW) bcast
                slab_ref[t * Cpad:(t + 1) * Cpad, :] = tap
        acc = jnp.dot(w9t_ref[...], slab_ref[...], preferred_element_type=f32)
        return jnp.maximum(acc + sh_ref[...], 0.0)            # (Cpad, HW) f32

    # ---- trunk: conv3x3 d=1 -> conv3x3 d=2, BN folded, ReLU after each ----
    t1 = conv3x3(init.astype(cdt), w9t1_ref, sh1_ref, m1_ref, 1)
    t2 = conv3x3(t1.astype(cdt), w9t2_ref, sh2_ref, m2_ref, 2)

    # ---- out = initial + trunk(initial) ----
    o_ref[...] = (o_ref[...].astype(f32) + t2[:Cout, :]).astype(o_ref.dtype)


# ----------------------------- wrapper ----------------------------------------

def fold_bn(bias, gamma, beta, mean, var, eps=1e-5):
    # BN(conv + bias) == conv * scale + shift   (inference-mode running stats)
    scale = gamma / jnp.sqrt(var + eps)
    shift = (bias - mean) * scale + beta
    return scale, shift


def _conv_tap_masks(H, W, d, dtype):
    """(9, H*W) {0,1} masks: tap t=(ky*3+kx) contributes at flat position
    y*W+x iff the read (y+(ky-1)d, x+(kx-1)d) lies inside the image."""
    yy, xx = np.meshgrid(np.arange(H), np.arange(W), indexing="ij")
    m = np.zeros((9, H * W), np.float32)
    for ky in range(3):
        for kx in range(3):
            oy, ox = (ky - 1) * d, (kx - 1) * d
            valid = ((yy + oy >= 0) & (yy + oy < H) &
                     (xx + ox >= 0) & (xx + ox < W))
            m[ky * 3 + kx] = valid.reshape(-1)
    return jnp.asarray(m, dtype=dtype)


def _pack_conv3x3(w_hwio, scale, cpad, cdt):
    """(3,3,Ci,Co) HWIO -> (cpad, 9*cpad) with the BN scale folded into the
    output channels; element [co, (ky*3+kx)*cpad + ci] == w[ky,kx,ci,co]."""
    ci, co = w_hwio.shape[2], w_hwio.shape[3]
    w = w_hwio * scale[None, None, None, :]
    w = jnp.pad(w, ((0, 0), (0, 0), (0, cpad - ci), (0, cpad - co)))
    return jnp.transpose(w, (3, 0, 1, 2)).reshape(cpad, 9 * cpad).astype(cdt)


def refinement_stage_block(x_nchw, p, *, compute_dtype=jnp.bfloat16,
                           out_dtype=None):
    """Forward pass.  x: (N, Cin, H, W) NCHW -> (N, Cout, H, W) NCHW."""
    N, Cin, H, W = x_nchw.shape
    Cout = p['w_init'].shape[1]
    HW = H * W
    cdt = compute_dtype
    out_dtype = x_nchw.dtype if out_dtype is None else out_dtype
    f32 = jnp.float32
    # Channels sit on the sublane axis -> only sublane-tile padding is needed
    # (16 covers both the f32 (8,128) and bf16 (16,128) tiles).
    Cpad = _round_up(Cout, 16)
    Cinp = _round_up(Cin, 16)

    # NCHW -> (N, Cin, H*W): a pure reshape (channels on sublanes, pixels on
    # lanes).  Pad channels to the sublane tile and cast to the compute dtype
    # once in the wrapper (halves input DMA on the bf16 path).
    x = x_nchw.reshape(N, Cin, HW)
    x = jnp.pad(x, ((0, 0), (0, Cinp - Cin), (0, 0))).astype(cdt)

    # Fold inference BN; pre-multiply the scales into the 3x3 weights.
    s1, sh1 = fold_bn(p['b_t1'], p['gamma_t1'], p['beta_t1'],
                      p['mean_t1'], p['var_t1'])
    s2, sh2 = fold_bn(p['b_t2'], p['gamma_t2'], p['beta_t2'],
                      p['mean_t2'], p['var_t2'])

    w1t = jnp.pad(p['w_init'].T, ((0, Cpad - Cout), (0, Cinp - Cin))).astype(cdt)
    b1 = jnp.pad(p['b_init'], (0, Cpad - Cout)).reshape(Cpad, 1).astype(f32)
    w9t1 = _pack_conv3x3(p['w_t1'], s1, Cpad, cdt)
    sh1p = jnp.pad(sh1, (0, Cpad - Cout)).reshape(Cpad, 1).astype(f32)
    w9t2 = _pack_conv3x3(p['w_t2'], s2, Cpad, cdt)
    sh2p = jnp.pad(sh2, (0, Cpad - Cout)).reshape(Cpad, 1).astype(f32)

    m1 = _conv_tap_masks(H, W, 1, cdt)           # (9, HW), d=1 taps
    m2 = _conv_tap_masks(H, W, 2, cdt)           # (9, HW), d=2 taps

    # VMEM budget: double-buffered in/out blocks + weights/masks + the im2col
    # scratch + live matmul temporaries, with headroom, clamped to ~80% of the
    # device's VMEM capacity (v7x: 64 MiB, v5e/v6e: 128 MiB).
    cb = jnp.dtype(cdt).itemsize
    ob = jnp.dtype(out_dtype).itemsize
    est = (2 * Cinp * HW * cb                      # x block (double-buffered)
           + 2 * Cout * HW * ob                    # out block
           + 2 * (Cpad * Cinp + 2 * 9 * Cpad * Cpad + 2 * 9 * HW) * cb
           + 2 * 3 * Cpad * 4                      # bias / folded BN shifts
           + 9 * Cpad * HW * cb                    # im2col scratch
           + 6 * Cpad * HW * 4)                    # live f32/cdt temporaries
    vmem_limit = max(2 * est, 32 << 20)
    cap = 64 << 20                                 # conservative floor (v7x)
    try:
        cap = pltpu.get_tpu_info().vmem_capacity_bytes
    except Exception:
        pass
    vmem_limit = int(min(vmem_limit, int(cap * 0.8)))

    kernel = functools.partial(_refinement_block_kernel,
                               W=W, HW=HW, Cpad=Cpad, cdt=cdt)
    out = pl.pallas_call(
        kernel,
        out_shape=jax.ShapeDtypeStruct((N, Cout, HW), out_dtype),
        grid=(N,),
        in_specs=[
            pl.BlockSpec((pl.Squeezed(), Cinp, HW), lambda n: (n, 0, 0)),  # x
            pl.BlockSpec((Cpad, Cinp), lambda n: (0, 0)),                  # W1^T
            pl.BlockSpec((Cpad, 1), lambda n: (0, 0)),                     # b1
            pl.BlockSpec((Cpad, 9 * Cpad), lambda n: (0, 0)),              # conv1 W
            pl.BlockSpec((Cpad, 1), lambda n: (0, 0)),                     # conv1 shift
            pl.BlockSpec((Cpad, 9 * Cpad), lambda n: (0, 0)),              # conv2 W
            pl.BlockSpec((Cpad, 1), lambda n: (0, 0)),                     # conv2 shift
            pl.BlockSpec((9, HW), lambda n: (0, 0)),                       # d=1 masks
            pl.BlockSpec((9, HW), lambda n: (0, 0)),                       # d=2 masks
        ],
        out_specs=pl.BlockSpec((pl.Squeezed(), Cout, HW), lambda n: (n, 0, 0)),
        scratch_shapes=[pltpu.VMEM((9 * Cpad, HW), cdt)],                  # im2col
        compiler_params=pltpu.CompilerParams(
            dimension_semantics=("parallel",),
            vmem_limit_bytes=vmem_limit),
    )(x, w1t, b1, w9t1, sh1p, w9t2, sh2p, m1, m2)

    # Output is already NCHW-flat and unpadded: pure reshape, no transpose.
    return out.reshape(N, Cout, H, W)


# --------------------------- params -------------------------------------------

def init_params(key, in_channels, out_channels):
    C = out_channels
    ks = jax.random.split(key, 12)

    def u(k, shape, fan_in):
        bound = 1.0 / math.sqrt(fan_in)
        return jax.random.uniform(k, shape, jnp.float32, -bound, bound)

    p = {}
    # initial: 1x1 conv (bias, no BN, ReLU); weight stored (Cin, Cout)
    p['w_init'] = u(ks[0], (in_channels, C), in_channels)
    p['b_init'] = u(ks[1], (C,), in_channels)
    # trunk conv 1: 3x3, pad=1, dil=1 (bias, BN, ReLU); weight (kh, kw, Cin, Cout)
    p['w_t1'] = u(ks[2], (3, 3, C, C), 9 * C)
    p['b_t1'] = u(ks[3], (C,), 9 * C)
    p['gamma_t1'] = 1.0 + 0.1 * jax.random.normal(ks[4], (C,), jnp.float32)
    p['beta_t1'] = 0.1 * jax.random.normal(ks[5], (C,), jnp.float32)
    p['mean_t1'] = 0.1 * jax.random.normal(ks[6], (C,), jnp.float32)
    p['var_t1'] = jnp.abs(jax.random.normal(ks[7], (C,), jnp.float32)) + 0.5
    # trunk conv 2: 3x3, pad=2, dil=2 (bias, BN, ReLU)
    p['w_t2'] = u(ks[8], (3, 3, C, C), 9 * C)
    p['b_t2'] = u(ks[9], (C,), 9 * C)
    p['gamma_t2'] = 1.0 + 0.1 * jax.random.normal(ks[10], (C,), jnp.float32)
    p['beta_t2'] = 0.1 * jax.random.normal(ks[11], (C,), jnp.float32)
    p['mean_t2'] = jnp.linspace(-0.2, 0.2, C, dtype=jnp.float32)
    p['var_t2'] = jnp.linspace(0.5, 1.5, C, dtype=jnp.float32)
    return p


# --------------------------- plain-JAX reference ------------------------------

def reference_forward(x_nchw, p, compute_dtype=jnp.float32):
    cdt = compute_dtype
    f32 = jnp.float32
    x = jnp.transpose(x_nchw, (0, 2, 3, 1)).astype(f32)
    init = jnp.maximum(
        jnp.einsum('nhwc,cd->nhwd', x.astype(cdt), p['w_init'].astype(cdt),
                   preferred_element_type=f32) + p['b_init'], 0.0)

    def conv(v, w, dil):
        return jax.lax.conv_general_dilated(
            v.astype(cdt), w.astype(cdt), window_strides=(1, 1),
            padding=((dil, dil), (dil, dil)), rhs_dilation=(dil, dil),
            dimension_numbers=('NHWC', 'HWIO', 'NHWC'),
            preferred_element_type=f32)

    s1, sh1 = fold_bn(p['b_t1'], p['gamma_t1'], p['beta_t1'],
                      p['mean_t1'], p['var_t1'])
    s2, sh2 = fold_bn(p['b_t2'], p['gamma_t2'], p['beta_t2'],
                      p['mean_t2'], p['var_t2'])
    t1 = jnp.maximum(conv(init, p['w_t1'] * s1, 1) + sh1, 0.0)
    t2 = jnp.maximum(conv(t1, p['w_t2'] * s2, 2) + sh2, 0.0)
    out = init + t2
    return jnp.transpose(out, (0, 3, 1, 2))


# --------------------------------- main ----------------------------------------

if __name__ == "__main__":
    key = jax.random.PRNGKey(0)
    kx_, kp = jax.random.split(key)

    N, Cin, Cout, H, W = 2, 8, 8, 16, 16
    x = jax.random.normal(kx_, (N, Cin, H, W), jnp.float32)   # PyTorch NCHW input
    params = init_params(kp, Cin, Cout)

    # f32 path: faithful to the PyTorch module's numerics.
    out_f32 = jax.block_until_ready(
        refinement_stage_block(x, params, compute_dtype=jnp.float32))
    assert out_f32.shape == (N, Cout, H, W)
    ref_f32 = reference_forward(x, params, compute_dtype=jnp.float32)
    err32 = float(jnp.max(jnp.abs(out_f32 - ref_f32)))
    assert jnp.allclose(out_f32, ref_f32, rtol=1e-4, atol=1e-4), err32

    # bf16-MXU path (default): bf16 operands, f32 accumulation, f32 output.
    out_bf16 = jax.block_until_ready(
        refinement_stage_block(x, params, compute_dtype=jnp.bfloat16))
    assert out_bf16.shape == (N, Cout, H, W)
    ref_bf16 = reference_forward(x, params, compute_dtype=jnp.bfloat16)
    err16 = float(jnp.max(jnp.abs(out_bf16 - ref_bf16)))
    assert jnp.allclose(out_bf16, ref_bf16, rtol=1e-2, atol=1e-2), err16

    print("KERNEL_OK")
</pallas_src>

<mosaic_0001>
module attributes {stable_mosaic.version = 11 : i64} {
  func.func @_refinement_block_kernel(%arg0: i32, %arg1: memref<1x16x256xf32, #tpu.memory_space<vmem>>, %arg2: memref<16x16xf32, #tpu.memory_space<vmem>>, %arg3: memref<16x1xf32, #tpu.memory_space<vmem>>, %arg4: memref<16x144xf32, #tpu.memory_space<vmem>>, %arg5: memref<16x1xf32, #tpu.memory_space<vmem>>, %arg6: memref<16x144xf32, #tpu.memory_space<vmem>>, %arg7: memref<16x1xf32, #tpu.memory_space<vmem>>, %arg8: memref<9x256xf32, #tpu.memory_space<vmem>>, %arg9: memref<9x256xf32, #tpu.memory_space<vmem>>, %arg10: memref<1x8x256xf32, #tpu.memory_space<vmem>>, %arg11: memref<144x256xf32, #tpu.memory_space<vmem>>) attributes {dimension_semantics = [#tpu.dimension_semantics<parallel>], iteration_bounds = array<i64: 2>, scalar_prefetch = 0 : i64, scratch_operands = 1 : i64, tpu.core_type = #tpu.core_type<tc>, window_params = [{transform_indices = @transform_0, window_bounds = array<i64: 1, 16, 256>}, {pipeline_mode = #tpu.pipeline_mode<synchronous>, transform_indices = @transform_1, window_bounds = array<i64: 16, 16>}, {pipeline_mode = #tpu.pipeline_mode<synchronous>, transform_indices = @transform_2, window_bounds = array<i64: 16, 1>}, {pipeline_mode = #tpu.pipeline_mode<synchronous>, transform_indices = @transform_3, window_bounds = array<i64: 16, 144>}, {pipeline_mode = #tpu.pipeline_mode<synchronous>, transform_indices = @transform_4, window_bounds = array<i64: 16, 1>}, {pipeline_mode = #tpu.pipeline_mode<synchronous>, transform_indices = @transform_5, window_bounds = array<i64: 16, 144>}, {pipeline_mode = #tpu.pipeline_mode<synchronous>, transform_indices = @transform_6, window_bounds = array<i64: 16, 1>}, {pipeline_mode = #tpu.pipeline_mode<synchronous>, transform_indices = @transform_7, window_bounds = array<i64: 9, 256>}, {pipeline_mode = #tpu.pipeline_mode<synchronous>, transform_indices = @transform_8, window_bounds = array<i64: 9, 256>}, {transform_indices = @transform_9, window_bounds = array<i64: 1, 8, 256>}]} {
    %c0 = arith.constant 0 : index
    %c0_0 = arith.constant 0 : index
    %0 = vector.load %arg2[%c0, %c0_0] : memref<16x16xf32, #tpu.memory_space<vmem>>, vector<16x16xf32>
    %c0_1 = arith.constant 0 : index
    %c0_2 = arith.constant 0 : index
    %c0_3 = arith.constant 0 : index
    %1 = vector.load %arg1[%c0_1, %c0_2, %c0_3] : memref<1x16x256xf32, #tpu.memory_space<vmem>>, vector<1x16x256xf32>
    %2 = vector.shape_cast %1 : vector<1x16x256xf32> to vector<16x256xf32>
    %cst = arith.constant dense<0.000000e+00> : vector<16x256xf32>
    %3 = tpu.matmul %0, %2, %cst {dimension_numbers = #tpu.dot_dimension_numbers<[1], [0], [0], [1], [0, 0, 1, 1], [], []>} : vector<16x16xf32>, vector<16x256xf32>, vector<16x256xf32> -> vector<16x256xf32>
    %c0_4 = arith.constant 0 : index
    %c0_5 = arith.constant 0 : index
    %4 = vector.load %arg3[%c0_4, %c0_5] : memref<16x1xf32, #tpu.memory_space<vmem>>, vector<16x1xf32>
    %5 = vector.broadcast %4 : vector<16x1xf32> to vector<16x256xf32>
    %6 = arith.addf %3, %5 : vector<16x256xf32>
    %cst_6 = arith.constant 0.000000e+00 : f32
    %7 = vector.broadcast %cst_6 : f32 to vector<16x256xf32>
    %8 = arith.maximumf %6, %7 : vector<16x256xf32>
    %9 = vector.extract_strided_slice %8 {offsets = [0, 0], sizes = [8, 256], strides = [1, 1]} : vector<16x256xf32> to vector<8x256xf32>
    %c0_7 = arith.constant 0 : index
    %c0_8 = arith.constant 0 : index
    %c0_9 = arith.constant 0 : index
    %10 = vector.load %arg10[%c0_7, %c0_8, %c0_9] : memref<1x8x256xf32, #tpu.memory_space<vmem>>, vector<1x8x256xf32>
    %11 = vector.shape_cast %10 : vector<1x8x256xf32> to vector<8x256xf32>
    %12 = vector.shape_cast %9 : vector<8x256xf32> to vector<1x8x256xf32>
    tpu.vector_store %arg10[%c0_7, %c0_8, %c0_9], %12 {strides = array<i32>} : memref<1x8x256xf32, #tpu.memory_space<vmem>>, vector<1x8x256xf32>,
    %c17_i32 = arith.constant 17 : i32
    %13 = tpu.dynamic_rotate %8 by %c17_i32 dim 1 : vector<16x256xf32>, i32 -> vector<16x256xf32>
    %c0_10 = arith.constant 0 : index
    %c0_11 = arith.constant 0 : index
    %14 = vector.load %arg8[%c0_10, %c0_11] : memref<9x256xf32, #tpu.memory_space<vmem>>, vector<1x256xf32>
    %15 = vector.broadcast %14 : vector<1x256xf32> to vector<16x256xf32>
    %16 = arith.mulf %13, %15 : vector<16x256xf32>
    %c0_12 = arith.constant 0 : index
    %c0_13 = arith.constant 0 : index
    %17 = vector.load %arg11[%c0_12, %c0_13] : memref<144x256xf32, #tpu.memory_space<vmem>>, vector<16x256xf32>
    tpu.vector_store %arg11[%c0_12, %c0_13], %16 {strides = array<i32>} : memref<144x256xf32, #tpu.memory_space<vmem>>, vector<16x256xf32>,
    %c16_i32 = arith.constant 16 : i32
    %18 = tpu.dynamic_rotate %8 by %c16_i32 dim 1 : vector<16x256xf32>, i32 -> vector<16x256xf32>
    %c1 = arith.constant 1 : index
    %c0_14 = arith.constant 0 : index
    %19 = vector.load %arg8[%c1, %c0_14] : memref<9x256xf32, #tpu.memory_space<vmem>>, vector<1x256xf32>
    %20 = vector.broadcast %19 : vector<1x256xf32> to vector<16x256xf32>
    %21 = arith.mulf %18, %20 : vector<16x256xf32>
    %c16 = arith.constant 16 : index
    %c0_15 = arith.constant 0 : index
    %22 = vector.load %arg11[%c16, %c0_15] : memref<144x256xf32, #tpu.memory_space<vmem>>, vector<16x256xf32>
    tpu.vector_store %arg11[%c16, %c0_15], %21 {strides = array<i32>} : memref<144x256xf32, #tpu.memory_space<vmem>>, vector<16x256xf32>,
    %c15_i32 = arith.constant 15 : i32
    %23 = tpu.dynamic_rotate %8 by %c15_i32 dim 1 : vector<16x256xf32>, i32 -> vector<16x256xf32>
    %c2 = arith.constant 2 : index
    %c0_16 = arith.constant 0 : index
    %24 = vector.load %arg8[%c2, %c0_16] : memref<9x256xf32, #tpu.memory_space<vmem>>, vector<1x256xf32>
    %25 = vector.broadcast %24 : vector<1x256xf32> to vector<16x256xf32>
    %26 = arith.mulf %23, %25 : vector<16x256xf32>
    %c32 = arith.constant 32 : index
    %c0_17 = arith.constant 0 : index
    %27 = vector.load %arg11[%c32, %c0_17] : memref<144x256xf32, #tpu.memory_space<vmem>>, vector<16x256xf32>
    tpu.vector_store %arg11[%c32, %c0_17], %26 {strides = array<i32>} : memref<144x256xf32, #tpu.memory_space<vmem>>, vector<16x256xf32>,
    %c1_i32 = arith.constant 1 : i32
    %28 = tpu.dynamic_rotate %8 by %c1_i32 dim 1 : vector<16x256xf32>, i32 -> vector<16x256xf32>
    %c3 = arith.constant 3 : index
    %c0_18 = arith.constant 0 : index
    %29 = vector.load %arg8[%c3, %c0_18] : memref<9x256xf32, #tpu.memory_space<vmem>>, vector<1x256xf32>
    %30 = vector.broadcast %29 : vector<1x256xf32> to vector<16x256xf32>
    %31 = arith.mulf %28, %30 : vector<16x256xf32>
    %c48 = arith.constant 48 : index
    %c0_19 = arith.constant 0 : index
    %32 = vector.load %arg11[%c48, %c0_19] : memref<144x256xf32, #tpu.memory_space<vmem>>, vector<16x256xf32>
    tpu.vector_store %arg11[%c48, %c0_19], %31 {strides = array<i32>} : memref<144x256xf32, #tpu.memory_space<vmem>>, vector<16x256xf32>,
    %c64 = arith.constant 64 : index
    %c0_20 = arith.constant 0 : index
    %33 = vector.load %arg11[%c64, %c0_20] : memref<144x256xf32, #tpu.memory_space<vmem>>, vector<16x256xf32>
    tpu.vector_store %arg11[%c64, %c0_20], %8 {strides = array<i32>} : memref<144x256xf32, #tpu.memory_space<vmem>>, vector<16x256xf32>,
    %c255_i32 = arith.constant 255 : i32
    %34 = tpu.dynamic_rotate %8 by %c255_i32 dim 1 : vector<16x256xf32>, i32 -> vector<16x256xf32>
    %c5 = arith.constant 5 : index
    %c0_21 = arith.constant 0 : index
    %35 = vector.load %arg8[%c5, %c0_21] : memref<9x256xf32, #tpu.memory_space<vmem>>, vector<1x256xf32>
    %36 = vector.broadcast %35 : vector<1x256xf32> to vector<16x256xf32>
    %37 = arith.mulf %34, %36 : vector<16x256xf32>
    %c80 = arith.constant 80 : index
    %c0_22 = arith.constant 0 : index
    %38 = vector.load %arg11[%c80, %c0_22] : memref<144x256xf32, #tpu.memory_space<vmem>>, vector<16x256xf32>
    tpu.vector_store %arg11[%c80, %c0_22], %37 {strides = array<i32>} : memref<144x256xf32, #tpu.memory_space<vmem>>, vector<16x256xf32>,
    %c241_i32 = arith.constant 241 : i32
    %39 = tpu.dynamic_rotate %8 by %c241_i32 dim 1 : vector<16x256xf32>, i32 -> vector<16x256xf32>
    %c6 = arith.constant 6 : index
    %c0_23 = arith.constant 0 : index
    %40 = vector.load %arg8[%c6, %c0_23] : memref<9x256xf32, #tpu.memory_space<vmem>>, vector<1x256xf32>
    %41 = vector.broadcast %40 : vector<1x256xf32> to vector<16x256xf32>
    %42 = arith.mulf %39, %41 : vector<16x256xf32>
    %c96 = arith.constant 96 : index
    %c0_24 = arith.constant 0 : index
    %43 = vector.load %arg11[%c96, %c0_24] : memref<144x256xf32, #tpu.memory_space<vmem>>, vector<16x256xf32>
    tpu.vector_store %arg11[%c96, %c0_24], %42 {strides = array<i32>} : memref<144x256xf32, #tpu.memory_space<vmem>>, vector<16x256xf32>,
    %c240_i32 = arith.constant 240 : i32
    %44 = tpu.dynamic_rotate %8 by %c240_i32 dim 1 : vector<16x256xf32>, i32 -> vector<16x256xf32>
    %c7 = arith.constant 7 : index
    %c0_25 = arith.constant 0 : index
    %45 = vector.load %arg8[%c7, %c0_25] : memref<9x256xf32, #tpu.memory_space<vmem>>, vector<1x256xf32>
    %46 = vector.broadcast %45 : vector<1x256xf32> to vector<16x256xf32>
    %47 = arith.mulf %44, %46 : vector<16x256xf32>
    %c112 = arith.constant 112 : index
    %c0_26 = arith.constant 0 : index
    %48 = vector.load %arg11[%c112, %c0_26] : memref<144x256xf32, #tpu.memory_space<vmem>>, vector<16x256xf32>
    tpu.vector_store %arg11[%c112, %c0_26], %47 {strides = array<i32>} : memref<144x256xf32, #tpu.memory_space<vmem>>, vector<16x256xf32>,
    %c239_i32 = arith.constant 239 : i32
    %49 = tpu.dynamic_rotate %8 by %c239_i32 dim 1 : vector<16x256xf32>, i32 -> vector<16x256xf32>
    %c8 = arith.constant 8 : index
    %c0_27 = arith.constant 0 : index
    %50 = vector.load %arg8[%c8, %c0_27] : memref<9x256xf32, #tpu.memory_space<vmem>>, vector<1x256xf32>
    %51 = vector.broadcast %50 : vector<1x256xf32> to vector<16x256xf32>
    %52 = arith.mulf %49, %51 : vector<16x256xf32>
    %c128 = arith.constant 128 : index
    %c0_28 = arith.constant 0 : index
    %53 = vector.load %arg11[%c128, %c0_28] : memref<144x256xf32, #tpu.memory_space<vmem>>, vector<16x256xf32>
    tpu.vector_store %arg11[%c128, %c0_28], %52 {strides = array<i32>} : memref<144x256xf32, #tpu.memory_space<vmem>>, vector<16x256xf32>,
    %c0_29 = arith.constant 0 : index
    %c0_30 = arith.constant 0 : index
    %54 = vector.load %arg4[%c0_29, %c0_30] : memref<16x144xf32, #tpu.memory_space<vmem>>, vector<16x144xf32>
    %c0_31 = arith.constant 0 : index
    %c0_32 = arith.constant 0 : index
    %55 = vector.load %arg11[%c0_31, %c0_32] : memref<144x256xf32, #tpu.memory_space<vmem>>, vector<144x256xf32>
    %cst_33 = arith.constant dense<0.000000e+00> : vector<16x256xf32>
    %56 = tpu.matmul %54, %55, %cst_33 {dimension_numbers = #tpu.dot_dimension_numbers<[1], [0], [0], [1], [0, 0, 1, 1], [], []>} : vector<16x144xf32>, vector<144x256xf32>, vector<16x256xf32> -> vector<16x256xf32>
    %c0_34 = arith.constant 0 : index
    %c0_35 = arith.constant 0 : index
    %57 = vector.load %arg5[%c0_34, %c0_35] : memref<16x1xf32, #tpu.memory_space<vmem>>, vector<16x1xf32>
    %58 = vector.broadcast %57 : vector<16x1xf32> to vector<16x256xf32>
    %59 = arith.addf %56, %58 : vector<16x256xf32>
    %cst_36 = arith.constant 0.000000e+00 : f32
    %60 = vector.broadcast %cst_36 : f32 to vector<16x256xf32>
    %61 = arith.maximumf %59, %60 : vector<16x256xf32>
    %c34_i32 = arith.constant 34 : i32
    %62 = tpu.dynamic_rotate %61 by %c34_i32 dim 1 : vector<16x256xf32>, i32 -> vector<16x256xf32>
    %c0_37 = arith.constant 0 : index
    %c0_38 = arith.constant 0 : index
    %63 = vector.load %arg9[%c0_37, %c0_38] : memref<9x256xf32, #tpu.memory_space<vmem>>, vector<1x256xf32>
    %64 = vector.broadcast %63 : vector<1x256xf32> to vector<16x256xf32>
    %65 = arith.mulf %62, %64 : vector<16x256xf32>
    %c0_39 = arith.constant 0 : index
    %c0_40 = arith.constant 0 : index
    %66 = vector.load %arg11[%c0_39, %c0_40] : memref<144x256xf32, #tpu.memory_space<vmem>>, vector<16x256xf32>
    tpu.vector_store %arg11[%c0_39, %c0_40], %65 {strides = array<i32>} : memref<144x256xf32, #tpu.memory_space<vmem>>, vector<16x256xf32>,
    %c32_i32 = arith.constant 32 : i32
    %67 = tpu.dynamic_rotate %61 by %c32_i32 dim 1 : vector<16x256xf32>, i32 -> vector<16x256xf32>
    %c1_41 = arith.constant 1 : index
    %c0_42 = arith.constant 0 : index
    %68 = vector.load %arg9[%c1_41, %c0_42] : memref<9x256xf32, #tpu.memory_space<vmem>>, vector<1x256xf32>
    %69 = vector.broadcast %68 : vector<1x256xf32> to vector<16x256xf32>
    %70 = arith.mulf %67, %69 : vector<16x256xf32>
    %c16_43 = arith.constant 16 : index
    %c0_44 = arith.constant 0 : index
    %71 = vector.load %arg11[%c16_43, %c0_44] : memref<144x256xf32, #tpu.memory_space<vmem>>, vector<16x256xf32>
    tpu.vector_store %arg11[%c16_43, %c0_44], %70 {strides = array<i32>} : memref<144x256xf32, #tpu.memory_space<vmem>>, vector<16x256xf32>,
    %c30_i32 = arith.constant 30 : i32
    %72 = tpu.dynamic_rotate %61 by %c30_i32 dim 1 : vector<16x256xf32>, i32 -> vector<16x256xf32>
    %c2_45 = arith.constant 2 : index
    %c0_46 = arith.constant 0 : index
    %73 = vector.load %arg9[%c2_45, %c0_46] : memref<9x256xf32, #tpu.memory_space<vmem>>, vector<1x256xf32>
    %74 = vector.broadcast %73 : vector<1x256xf32> to vector<16x256xf32>
    %75 = arith.mulf %72, %74 : vector<16x256xf32>
    %c32_47 = arith.constant 32 : index
    %c0_48 = arith.constant 0 : index
    %76 = vector.load %arg11[%c32_47, %c0_48] : memref<144x256xf32, #tpu.memory_space<vmem>>, vector<16x256xf32>
    tpu.vector_store %arg11[%c32_47, %c0_48], %75 {strides = array<i32>} : memref<144x256xf32, #tpu.memory_space<vmem>>, vector<16x256xf32>,
    %c2_i32 = arith.constant 2 : i32
    %77 = tpu.dynamic_rotate %61 by %c2_i32 dim 1 : vector<16x256xf32>, i32 -> vector<16x256xf32>
    %c3_49 = arith.constant 3 : index
    %c0_50 = arith.constant 0 : index
    %78 = vector.load %arg9[%c3_49, %c0_50] : memref<9x256xf32, #tpu.memory_space<vmem>>, vector<1x256xf32>
    %79 = vector.broadcast %78 : vector<1x256xf32> to vector<16x256xf32>
    %80 = arith.mulf %77, %79 : vector<16x256xf32>
    %c48_51 = arith.constant 48 : index
    %c0_52 = arith.constant 0 : index
    %81 = vector.load %arg11[%c48_51, %c0_52] : memref<144x256xf32, #tpu.memory_space<vmem>>, vector<16x256xf32>
    tpu.vector_store %arg11[%c48_51, %c0_52], %80 {strides = array<i32>} : memref<144x256xf32, #tpu.memory_space<vmem>>, vector<16x256xf32>,
    %c64_53 = arith.constant 64 : index
    %c0_54 = arith.constant 0 : index
    %82 = vector.load %arg11[%c64_53, %c0_54] : memref<144x256xf32, #tpu.memory_space<vmem>>, vector<16x256xf32>
    tpu.vector_store %arg11[%c64_53, %c0_54], %61 {strides = array<i32>} : memref<144x256xf32, #tpu.memory_space<vmem>>, vector<16x256xf32>,
    %c254_i32 = arith.constant 254 : i32
    %83 = tpu.dynamic_rotate %61 by %c254_i32 dim 1 : vector<16x256xf32>, i32 -> vector<16x256xf32>
    %c5_55 = arith.constant 5 : index
    %c0_56 = arith.constant 0 : index
    %84 = vector.load %arg9[%c5_55, %c0_56] : memref<9x256xf32, #tpu.memory_space<vmem>>, vector<1x256xf32>
    %85 = vector.broadcast %84 : vector<1x256xf32> to vector<16x256xf32>
    %86 = arith.mulf %83, %85 : vector<16x256xf32>
    %c80_57 = arith.constant 80 : index
    %c0_58 = arith.constant 0 : index
    %87 = vector.load %arg11[%c80_57, %c0_58] : memref<144x256xf32, #tpu.memory_space<vmem>>, vector<16x256xf32>
    tpu.vector_store %arg11[%c80_57, %c0_58], %86 {strides = array<i32>} : memref<144x256xf32, #tpu.memory_space<vmem>>, vector<16x256xf32>,
    %c226_i32 = arith.constant 226 : i32
    %88 = tpu.dynamic_rotate %61 by %c226_i32 dim 1 : vector<16x256xf32>, i32 -> vector<16x256xf32>
    %c6_59 = arith.constant 6 : index
    %c0_60 = arith.constant 0 : index
    %89 = vector.load %arg9[%c6_59, %c0_60] : memref<9x256xf32, #tpu.memory_space<vmem>>, vector<1x256xf32>
    %90 = vector.broadcast %89 : vector<1x256xf32> to vector<16x256xf32>
    %91 = arith.mulf %88, %90 : vector<16x256xf32>
    %c96_61 = arith.constant 96 : index
    %c0_62 = arith.constant 0 : index
    %92 = vector.load %arg11[%c96_61, %c0_62] : memref<144x256xf32, #tpu.memory_space<vmem>>, vector<16x256xf32>
    tpu.vector_store %arg11[%c96_61, %c0_62], %91 {strides = array<i32>} : memref<144x256xf32, #tpu.memory_space<vmem>>, vector<16x256xf32>,
    %c224_i32 = arith.constant 224 : i32
    %93 = tpu.dynamic_rotate %61 by %c224_i32 dim 1 : vector<16x256xf32>, i32 -> vector<16x256xf32>
    %c7_63 = arith.constant 7 : index
    %c0_64 = arith.constant 0 : index
    %94 = vector.load %arg9[%c7_63, %c0_64] : memref<9x256xf32, #tpu.memory_space<vmem>>, vector<1x256xf32>
    %95 = vector.broadcast %94 : vector<1x256xf32> to vector<16x256xf32>
    %96 = arith.mulf %93, %95 : vector<16x256xf32>
    %c112_65 = arith.constant 112 : index
    %c0_66 = arith.constant 0 : index
    %97 = vector.load %arg11[%c112_65, %c0_66] : memref<144x256xf32, #tpu.memory_space<vmem>>, vector<16x256xf32>
    tpu.vector_store %arg11[%c112_65, %c0_66], %96 {strides = array<i32>} : memref<144x256xf32, #tpu.memory_space<vmem>>, vector<16x256xf32>,
    %c222_i32 = arith.constant 222 : i32
    %98 = tpu.dynamic_rotate %61 by %c222_i32 dim 1 : vector<16x256xf32>, i32 -> vector<16x256xf32>
    %c8_67 = arith.constant 8 : index
    %c0_68 = arith.constant 0 : index
    %99 = vector.load %arg9[%c8_67, %c0_68] : memref<9x256xf32, #tpu.memory_space<vmem>>, vector<1x256xf32>
    %100 = vector.broadcast %99 : vector<1x256xf32> to vector<16x256xf32>
    %101 = arith.mulf %98, %100 : vector<16x256xf32>
    %c128_69 = arith.constant 128 : index
    %c0_70 = arith.constant 0 : index
    %102 = vector.load %arg11[%c128_69, %c0_70] : memref<144x256xf32, #tpu.memory_space<vmem>>, vector<16x256xf32>
    tpu.vector_store %arg11[%c128_69, %c0_70], %101 {strides = array<i32>} : memref<144x256xf32, #tpu.memory_space<vmem>>, vector<16x256xf32>,
    %c0_71 = arith.constant 0 : index
    %c0_72 = arith.constant 0 : index
    %103 = vector.load %arg6[%c0_71, %c0_72] : memref<16x144xf32, #tpu.memory_space<vmem>>, vector<16x144xf32>
    %c0_73 = arith.constant 0 : index
    %c0_74 = arith.constant 0 : index
    %104 = vector.load %arg11[%c0_73, %c0_74] : memref<144x256xf32, #tpu.memory_space<vmem>>, vector<144x256xf32>
    %cst_75 = arith.constant dense<0.000000e+00> : vector<16x256xf32>
    %105 = tpu.matmul %103, %104, %cst_75 {dimension_numbers = #tpu.dot_dimension_numbers<[1], [0], [0], [1], [0, 0, 1, 1], [], []>} : vector<16x144xf32>, vector<144x256xf32>, vector<16x256xf32> -> vector<16x256xf32>
    %c0_76 = arith.constant 0 : index
    %c0_77 = arith.constant 0 : index
    %106 = vector.load %arg7[%c0_76, %c0_77] : memref<16x1xf32, #tpu.memory_space<vmem>>, vector<16x1xf32>
    %107 = vector.broadcast %106 : vector<16x1xf32> to vector<16x256xf32>
    %108 = arith.addf %105, %107 : vector<16x256xf32>
    %cst_78 = arith.constant 0.000000e+00 : f32
    %109 = vector.broadcast %cst_78 : f32 to vector<16x256xf32>
    %110 = arith.maximumf %108, %109 : vector<16x256xf32>
    %c0_79 = arith.constant 0 : index
    %c0_80 = arith.constant 0 : index
    %c0_81 = arith.constant 0 : index
    %111 = vector.load %arg10[%c0_79, %c0_80, %c0_81] : memref<1x8x256xf32, #tpu.memory_space<vmem>>, vector<1x8x256xf32>
    %112 = vector.shape_cast %111 : vector<1x8x256xf32> to vector<8x256xf32>
    %113 = vector.extract_strided_slice %110 {offsets = [0, 0], sizes = [8, 256], strides = [1, 1]} : vector<16x256xf32> to vector<8x256xf32>
    %114 = arith.addf %112, %113 : vector<8x256xf32>
    %c0_82 = arith.constant 0 : index
    %c0_83 = arith.constant 0 : index
    %c0_84 = arith.constant 0 : index
    %115 = vector.load %arg10[%c0_82, %c0_83, %c0_84] : memref<1x8x256xf32, #tpu.memory_space<vmem>>, vector<1x8x256xf32>
    %116 = vector.shape_cast %115 : vector<1x8x256xf32> to vector<8x256xf32>
    %117 = vector.shape_cast %114 : vector<8x256xf32> to vector<1x8x256xf32>
    tpu.vector_store %arg10[%c0_82, %c0_83, %c0_84], %117 {strides = array<i32>} : memref<1x8x256xf32, #tpu.memory_space<vmem>>, vector<1x8x256xf32>,
    return
  }
  func.func @transform_0(%arg0: i32) -> (i32, i32, i32) {
    %c0_i32 = arith.constant 0 : i32
    %c0_i32_0 = arith.constant 0 : i32
    %c0_i32_1 = arith.constant 0 : i32
    return %arg0, %c0_i32, %c0_i32_0 : i32, i32, i32
  }
  func.func @transform_1(%arg0: i32) -> (i32, i32) {
    %c0_i32 = arith.constant 0 : i32
    %c0_i32_0 = arith.constant 0 : i32
    %c0_i32_1 = arith.constant 0 : i32
    return %c0_i32, %c0_i32_0 : i32, i32
  }
  func.func @transform_2(%arg0: i32) -> (i32, i32) {
    %c0_i32 = arith.constant 0 : i32
    %c0_i32_0 = arith.constant 0 : i32
    %c0_i32_1 = arith.constant 0 : i32
    return %c0_i32, %c0_i32_0 : i32, i32
  }
  func.func @transform_3(%arg0: i32) -> (i32, i32) {
    %c0_i32 = arith.constant 0 : i32
    %c0_i32_0 = arith.constant 0 : i32
    %c0_i32_1 = arith.constant 0 : i32
    return %c0_i32, %c0_i32_0 : i32, i32
  }
  func.func @transform_4(%arg0: i32) -> (i32, i32) {
    %c0_i32 = arith.constant 0 : i32
    %c0_i32_0 = arith.constant 0 : i32
    %c0_i32_1 = arith.constant 0 : i32
    return %c0_i32, %c0_i32_0 : i32, i32
  }
  func.func @transform_5(%arg0: i32) -> (i32, i32) {
    %c0_i32 = arith.constant 0 : i32
    %c0_i32_0 = arith.constant 0 : i32
    %c0_i32_1 = arith.constant 0 : i32
    return %c0_i32, %c0_i32_0 : i32, i32
  }
  func.func @transform_6(%arg0: i32) -> (i32, i32) {
    %c0_i32 = arith.constant 0 : i32
    %c0_i32_0 = arith.constant 0 : i32
    %c0_i32_1 = arith.constant 0 : i32
    return %c0_i32, %c0_i32_0 : i32, i32
  }
  func.func @transform_7(%arg0: i32) -> (i32, i32) {
    %c0_i32 = arith.constant 0 : i32
    %c0_i32_0 = arith.constant 0 : i32
    %c0_i32_1 = arith.constant 0 : i32
    return %c0_i32, %c0_i32_0 : i32, i32
  }
  func.func @transform_8(%arg0: i32) -> (i32, i32) {
    %c0_i32 = arith.constant 0 : i32
    %c0_i32_0 = arith.constant 0 : i32
    %c0_i32_1 = arith.constant 0 : i32
    return %c0_i32, %c0_i32_0 : i32, i32
  }
  func.func @transform_9(%arg0: i32) -> (i32, i32, i32) {
    %c0_i32 = arith.constant 0 : i32
    %c0_i32_0 = arith.constant 0 : i32
    %c0_i32_1 = arith.constant 0 : i32
    return %arg0, %c0_i32, %c0_i32_0 : i32, i32, i32
  }
}

</mosaic_0001>

<llo_original>
// kernel: tpu_custom_call.1
$region0: #{tpu_custom_call.1}
  #allocation0 [shape = 'u32[]', space=smem, size = 0x4, offset = 0x4, fixed_abs, tag = 'smem constant byte address 0x4 - core index']
  #allocation1 [shape = 'u32[72,128]{1,0:T(1,128)}', space=vmem, size = 0x9000, scoped, tag = 'internal scratch']
  #allocation2 [shape = 'f32[144,256]{1,0:T(8,128)}', space=vmem, size = 0x24000, scoped, tag = 'scratch operand']
  %s0 = inlined_call_operand.hbm [shape: f32[2,16,256], index: 0, kind: input, shape index: {}]
  %s1 = inlined_call_operand.vmem [shape: f32[16,16], index: 1, kind: input, shape index: {}]
  %s2 = inlined_call_operand.vmem [shape: f32[16,1], index: 2, kind: input, shape index: {}]
  %s3 = inlined_call_operand.vmem [shape: f32[16,144], index: 3, kind: input, shape index: {}]
  %s4 = inlined_call_operand.vmem [shape: f32[16,1], index: 4, kind: input, shape index: {}]
  %s5 = inlined_call_operand.hbm [shape: f32[16,144], index: 5, kind: input, shape index: {}]
  %s6 = inlined_call_operand.vmem [shape: f32[16,1], index: 6, kind: input, shape index: {}]
  %s7 = inlined_call_operand.hbm [shape: f32[9,256], index: 7, kind: input, shape index: {}]
  %s8 = inlined_call_operand.hbm [shape: f32[9,256], index: 8, kind: input, shape index: {}]
  %s9 = inlined_call_operand.hbm [shape: f32[2,8,256], index: 9, kind: output, shape index: {}]
  %s10 = sld [smem:[#allocation0]]
  $region85: #{tpu_custom_call.1} parent=0
    _
  %s12 = ssub.s32 1, %s10
  %s13 = scalar_select 0, %s12, %s10
  $region1: #{tpu_custom_call.1} parent=0
    #allocation3 [shape = 'u8[32768]{0}', space=vmem, size = 0x8000, scoped, tag = 'input window, operand 0']
    #allocation4 [shape = 's32[2]{0}', space=sflag, size = 0x8, scoped, tag = 'scoped memory for tpu_custom_call.1']
    #allocation5 [shape = 's32[2]{0}', space=sflag, size = 0x8, scoped, tag = 'scoped memory for tpu_custom_call.1']
    #allocation6 [shape = 'u8[16384]{0}', space=vmem, size = 0x4000, scoped, tag = 'input window, operand 5, single buffered']
    #allocation7 [shape = 's32[1]{0}', space=sflag, size = 0x4, scoped, tag = 'scoped memory for tpu_custom_call.1']
    #allocation8 [shape = 'u8[16384]{0}', space=vmem, size = 0x4000, scoped, tag = 'input window, operand 7, single buffered']
    #allocation9 [shape = 'u8[16384]{0}', space=vmem, size = 0x4000, scoped, tag = 'input window, operand 8, single buffered']
    #allocation10 [shape = 's32[1]{0}', space=sflag, size = 0x4, scoped, tag = 'scoped memory for tpu_custom_call.1']
    #allocation11 [shape = 'u8[16384]{0}', space=vmem, size = 0x4000, scoped, tag = 'output window, operand 0']
    %14 = vsyncpa [#allocation4], 0
    %s15 = scalar_lea.sflag [#allocation4], 1
    %16 = vsyncpa %s15, 0
    %17 = vsyncpa [#allocation7], 0
    %18 = vsyncpa [#allocation10], 0
    %19 = vsyncpa [#allocation5], 0
    %s20 = scalar_lea.sflag [#allocation5], 1
    %21 = vsyncpa %s20, 0
    loop: start=0, step=1, limit=4
    $region2: #{tpu_custom_call.1} parent=1 // loop_pre_header
      _
    $region3: #{tpu_custom_call.1} parent=1 // loop_header
      %s23 = sphi 0, %s27
      %p24 = scmp.ge.s32.totalorder %s23, 4
      %s33 = sphi 0, %s35
      %s36 = sphi 0, %s33
      %s37 = sphi 0, %s36
      %s53 = sphi 0, %s37
      %s57 = sphi 0, %s57
      %s59 = sphi 0, %s57
      %s60 = sphi 0, %s59
      %s74 = sphi 0, %s60
      %s78 = sphi 0, %s78
      %s80 = sphi 0, %s78
      %s81 = sphi 0, %s80
      %s95 = sphi 0, %s81
      %s99 = sphi 0, %s99
      %s101 = sphi 0, %s99
      %s102 = sphi 0, %s101
      %s116 = sphi 0, %s102
      %s120 = sphi 0, %s120
      %s122 = sphi 0, %s120
      %s123 = sphi 0, %s122
      %s137 = sphi 0, %s123
      %s141 = sphi 0, %s141
      %s143 = sphi 0, %s141
      %s144 = sphi 0, %s143
      %s158 = sphi 0, %s144
      %s162 = sphi 0, %s162
      %s164 = sphi 0, %s162
      %s165 = sphi 0, %s164
      %s179 = sphi 0, %s165
      %s183 = sphi 0, %s183
      %s185 = sphi 0, %s183
      %s186 = sphi 0, %s185
      %s200 = sphi 0, %s186
      %s204 = sphi 0, %s204
      %s206 = sphi 0, %s204
      %s207 = sphi 0, %s206
      %s221 = sphi 0, %s207
      %s227 = sphi 0, %s229
      %s230 = sphi 0, %s227
      %s231 = sphi 0, %s230
      %s247 = sphi 0, %s231
    $region4: #{tpu_custom_call.1} parent=1 // loop_header_branch
      %26 = sbr.rel (%p24) target = $region8
    $region5: #{tpu_custom_call.1} parent=1 // loop_body
      %s28 = ssub.s32 %s23, 1
      %s29 = ssub.s32 %s23, 2
      %s30 = sadd.s32 %s23, 1
      %s31 = ssub.s32 %s23, %s30
      %p32 = scmp.eq.s32.totalorder %s31, 0
      %s34 = sadd.s32 %s33, 1
      %s35 = scalar_select %p32, %s33, %s34
      %p38 = pneg %p32
      %p39 = scmp.eq.s32.totalorder %s23, 1
      %p40 = por %p38, %p39
      %p41 = scmp.ne.s32.totalorder %s33, %s36
      %p42 = scmp.eq.s32.totalorder %s23, 0
      %p43 = por %p41, %p42
      %p44 = scmp.ne.s32.totalorder %s33, %s36
      %p45 = scmp.eq.s32.totalorder %s28, 1
      %p46 = por %p44, %p45
      %p47 = scmp.ne.s32.totalorder %s36, %s37
      %p48 = scmp.eq.s32.totalorder %s28, 0
      %p49 = por %p47, %p48
      %p50 = scmp.ne.s32.totalorder %s36, %s37
      %p51 = scmp.eq.s32.totalorder %s29, 1
      %p52 = por %p50, %p51
      %p54 = scmp.ne.s32.totalorder %s37, %s53
      %p55 = scmp.eq.s32.totalorder %s29, 0
      %p56 = por %p54, %p55
      %s58 = sadd.s32 %s57, 1
      %p61 = scmp.eq.s32.totalorder %s23, 1
      %p62 = scmp.ne.s32.totalorder %s57, %s59
      %p63 = scmp.eq.s32.totalorder %s23, 0
      %p64 = por %p62, %p63
      %p65 = scmp.ne.s32.totalorder %s57, %s59
      %p66 = scmp.eq.s32.totalorder %s28, 1
      %p67 = por %p65, %p66
      %p68 = scmp.ne.s32.totalorder %s59, %s60
      %p69 = scmp.eq.s32.totalorder %s28, 0
      %p70 = por %p68, %p69
      %p71 = scmp.ne.s32.totalorder %s59, %s60
      %p72 = scmp.eq.s32.totalorder %s29, 1
      %p73 = por %p71, %p72
      %p75 = scmp.ne.s32.totalorder %s60, %s74
      %p76 = scmp.eq.s32.totalorder %s29, 0
      %p77 = por %p75, %p76
      %s79 = sadd.s32 %s78, 1
      %p82 = scmp.eq.s32.totalorder %s23, 1
      %p83 = scmp.ne.s32.totalorder %s78, %s80
      %p84 = scmp.eq.s32.totalorder %s23, 0
      %p85 = por %p83, %p84
      %p86 = scmp.ne.s32.totalorder %s78, %s80
      %p87 = scmp.eq.s32.totalorder %s28, 1
      %p88 = por %p86, %p87
      %p89 = scmp.ne.s32.totalorder %s80, %s81
      %p90 = scmp.eq.s32.totalorder %s28, 0
      %p91 = por %p89, %p90
      %p92 = scmp.ne.s32.totalorder %s80, %s81
      %p93 = scmp.eq.s32.totalorder %s29, 1
      %p94 = por %p92, %p93
      %p96 = scmp.ne.s32.totalorder %s81, %s95
      %p97 = scmp.eq.s32.totalorder %s29, 0
      %p98 = por %p96, %p97
      %s100 = sadd.s32 %s99, 1
      %p103 = scmp.eq.s32.totalorder %s23, 1
      %p104 = scmp.ne.s32.totalorder %s99, %s101
      %p105 = scmp.eq.s32.totalorder %s23, 0
      %p106 = por %p104, %p105
      %p107 = scmp.ne.s32.totalorder %s99, %s101
      %p108 = scmp.eq.s32.totalorder %s28, 1
      %p109 = por %p107, %p108
      %p110 = scmp.ne.s32.totalorder %s101, %s102
      %p111 = scmp.eq.s32.totalorder %s28, 0
      %p112 = por %p110, %p111
      %p113 = scmp.ne.s32.totalorder %s101, %s102
      %p114 = scmp.eq.s32.totalorder %s29, 1
      %p115 = por %p113, %p114
      %p117 = scmp.ne.s32.totalorder %s102, %s116
      %p118 = scmp.eq.s32.totalorder %s29, 0
      %p119 = por %p117, %p118
      %s121 = sadd.s32 %s120, 1
      %p124 = scmp.eq.s32.totalorder %s23, 1
      %p125 = scmp.ne.s32.totalorder %s120, %s122
      %p126 = scmp.eq.s32.totalorder %s23, 0
      %p127 = por %p125, %p126
      %p128 = scmp.ne.s32.totalorder %s120, %s122
      %p129 = scmp.eq.s32.totalorder %s28, 1
      %p130 = por %p128, %p129
      %p131 = scmp.ne.s32.totalorder %s122, %s123
      %p132 = scmp.eq.s32.totalorder %s28, 0
      %p133 = por %p131, %p132
      %p134 = scmp.ne.s32.totalorder %s122, %s123
      %p135 = scmp.eq.s32.totalorder %s29, 1
      %p136 = por %p134, %p135
      %p138 = scmp.ne.s32.totalorder %s123, %s137
      %p139 = scmp.eq.s32.totalorder %s29, 0
      %p140 = por %p138, %p139
      %s142 = sadd.s32 %s141, 1
      %p145 = scmp.eq.s32.totalorder %s23, 1
      %p146 = scmp.ne.s32.totalorder %s141, %s143
      %p147 = scmp.eq.s32.totalorder %s23, 0
      %p148 = por %p146, %p147
      %p149 = scmp.ne.s32.totalorder %s141, %s143
      %p150 = scmp.eq.s32.totalorder %s28, 1
      %p151 = por %p149, %p150
      %p152 = scmp.ne.s32.totalorder %s143, %s144
      %p153 = scmp.eq.s32.totalorder %s28, 0
      %p154 = por %p152, %p153
      %p155 = scmp.ne.s32.totalorder %s143, %s144
      %p156 = scmp.eq.s32.totalorder %s29, 1
      %p157 = por %p155, %p156
      %p159 = scmp.ne.s32.totalorder %s144, %s158
      %p160 = scmp.eq.s32.totalorder %s29, 0
      %p161 = por %p159, %p160
      %s163 = sadd.s32 %s162, 1
      %p166 = scmp.eq.s32.totalorder %s23, 1
      %p167 = scmp.ne.s32.totalorder %s162, %s164
      %p168 = scmp.eq.s32.totalorder %s23, 0
      %p169 = por %p167, %p168
      %p170 = scmp.ne.s32.totalorder %s162, %s164
      %p171 = scmp.eq.s32.totalorder %s28, 1
      %p172 = por %p170, %p171
      %p173 = scmp.ne.s32.totalorder %s164, %s165
      %p174 = scmp.eq.s32.totalorder %s28, 0
      %p175 = por %p173, %p174
      %p176 = scmp.ne.s32.totalorder %s164, %s165
      %p177 = scmp.eq.s32.totalorder %s29, 1
      %p178 = por %p176, %p177
      %p180 = scmp.ne.s32.totalorder %s165, %s179
      %p181 = scmp.eq.s32.totalorder %s29, 0
      %p182 = por %p180, %p181
      %s184 = sadd.s32 %s183, 1
      %p187 = scmp.eq.s32.totalorder %s23, 1
      %p188 = scmp.ne.s32.totalorder %s183, %s185
      %p189 = scmp.eq.s32.totalorder %s23, 0
      %p190 = por %p188, %p189
      %p191 = scmp.ne.s32.totalorder %s183, %s185
      %p192 = scmp.eq.s32.totalorder %s28, 1
      %p193 = por %p191, %p192
      %p194 = scmp.ne.s32.totalorder %s185, %s186
      %p195 = scmp.eq.s32.totalorder %s28, 0
      %p196 = por %p194, %p195
      %p197 = scmp.ne.s32.totalorder %s185, %s186
      %p198 = scmp.eq.s32.totalorder %s29, 1
      %p199 = por %p197, %p198
      %p201 = scmp.ne.s32.totalorder %s186, %s200
      %p202 = scmp.eq.s32.totalorder %s29, 0
      %p203 = por %p201, %p202
      %s205 = sadd.s32 %s204, 1
      %p208 = scmp.eq.s32.totalorder %s23, 1
      %p209 = scmp.ne.s32.totalorder %s204, %s206
      %p210 = scmp.eq.s32.totalorder %s23, 0
      %p211 = por %p209, %p210
      %p212 = scmp.ne.s32.totalorder %s204, %s206
      %p213 = scmp.eq.s32.totalorder %s28, 1
      %p214 = por %p212, %p213
      %p215 = scmp.ne.s32.totalorder %s206, %s207
      %p216 = scmp.eq.s32.totalorder %s28, 0
      %p217 = por %p215, %p216
      %p218 = scmp.ne.s32.totalorder %s206, %s207
      %p219 = scmp.eq.s32.totalorder %s29, 1
      %p220 = por %p218, %p219
      %p222 = scmp.ne.s32.totalorder %s207, %s221
      %p223 = scmp.eq.s32.totalorder %s29, 0
      %p224 = por %p222, %p223
      %s225 = ssub.s32 %s23, %s30
      %p226 = scmp.eq.s32.totalorder %s225, 0
      %s228 = sadd.s32 %s227, 1
      %s229 = scalar_select %p226, %s227, %s228
      %p232 = pneg %p226
      %p233 = scmp.eq.s32.totalorder %s23, 1
      %p234 = por %p232, %p233
      %p235 = scmp.ne.s32.totalorder %s227, %s230
      %p236 = scmp.eq.s32.totalorder %s23, 0
      %p237 = por %p235, %p236
      %p238 = scmp.ne.s32.totalorder %s227, %s230
      %p239 = scmp.eq.s32.totalorder %s28, 1
      %p240 = por %p238, %p239
      %p241 = scmp.ne.s32.totalorder %s230, %s231
      %p242 = scmp.eq.s32.totalorder %s28, 0
      %p243 = por %p241, %p242
      %p244 = scmp.ne.s32.totalorder %s230, %s231
      %p245 = scmp.eq.s32.totalorder %s29, 1
      %p246 = por %p244, %p245
      %p248 = scmp.ne.s32.totalorder %s231, %s247
      %p249 = scmp.eq.s32.totalorder %s29, 0
      %p250 = por %p248, %p249
      %p251 = scmp.le.s32.totalorder 1, %s23
      %p252 = scmp.lt.s32.totalorder %s23, 3
      %p253 = pnand %p251, %p252
      %p254 = pneg %p253
      // Predicated region
      $region9: #{tpu_custom_call.1} parent=5 // pred_check
        _
      $region10: #{tpu_custom_call.1} parent=5 // pred_check_branch
        %256 = sbr.rel (%p253) target = $region12
      $region11: #{tpu_custom_call.1} parent=5 // pred_region
        %s257 = ssub.s32 %s23, 1
        // Predicated region
        $region13: #{tpu_custom_call.1} parent=11 // pred_check
          %p258 = pneg %p70
        $region14: #{tpu_custom_call.1} parent=11 // pred_check_branch
          %260 = sbr.rel (%p258) target = $region16
        $region15: #{tpu_custom_call.1} parent=11 // pred_region
          _
        $region16: #{tpu_custom_call.1} parent=11 // pred_fallthru
          _
        // Predicated region
        $region17: #{tpu_custom_call.1} parent=11 // pred_check
          %p261 = pneg %p91
        $region18: #{tpu_custom_call.1} parent=11 // pred_check_branch
          %263 = sbr.rel (%p261) target = $region20
        $region19: #{tpu_custom_call.1} parent=11 // pred_region
          _
        $region20: #{tpu_custom_call.1} parent=11 // pred_fallthru
          _
        // Predicated region
        $region21: #{tpu_custom_call.1} parent=11 // pred_check
          %p264 = pneg %p112
        $region22: #{tpu_custom_call.1} parent=11 // pred_check_branch
          %266 = sbr.rel (%p264) target = $region24
        $region23: #{tpu_custom_call.1} parent=11 // pred_region
          _
        $region24: #{tpu_custom_call.1} parent=11 // pred_fallthru
          _
        // Predicated region
        $region25: #{tpu_custom_call.1} parent=11 // pred_check
          %p267 = pneg %p133
        $region26: #{tpu_custom_call.1} parent=11 // pred_check_branch
          %269 = sbr.rel (%p267) target = $region28
        $region27: #{tpu_custom_call.1} parent=11 // pred_region
          _
        $region28: #{tpu_custom_call.1} parent=11 // pred_fallthru
          _
        // Predicated region
        $region29: #{tpu_custom_call.1} parent=11 // pred_check
          %p270 = pneg %p154
        $region30: #{tpu_custom_call.1} parent=11 // pred_check_branch
          %272 = sbr.rel (%p270) target = $region32
        $region31: #{tpu_custom_call.1} parent=11 // pred_region
          %274 = vsyncadd [#allocation7], 0
          %s275 = sshll.u32 %s5, 4
          %s276 = int_to_ptr.hbm [resolvable:$true] %s275
          %s277 = sshll.u32 [#allocation6], 4
          %s278 = int_to_ptr.vmem [resolvable:$true] %s277
          %283 = dma.hbm_to_vmem [thread:$0]  %s276, 512, %s278, [#allocation7], 256, 256, 16
        $region32: #{tpu_custom_call.1} parent=11 // pred_fallthru
          _
        // Predicated region
        $region33: #{tpu_custom_call.1} parent=11 // pred_check
          %p284 = pneg %p175
        $region34: #{tpu_custom_call.1} parent=11 // pred_check_branch
          %286 = sbr.rel (%p284) target = $region36
        $region35: #{tpu_custom_call.1} parent=11 // pred_region
          _
        $region36: #{tpu_custom_call.1} parent=11 // pred_fallthru
          _
        // Predicated region
        $region37: #{tpu_custom_call.1} parent=11 // pred_check
          %p287 = pneg %p196
        $region38: #{tpu_custom_call.1} parent=11 // pred_check_branch
          %289 = sbr.rel (%p287) target = $region40
        $region39: #{tpu_custom_call.1} parent=11 // pred_region
          %291 = vsyncadd [#allocation7], 0
          %s292 = sshll.u32 %s7, 4
          %s293 = int_to_ptr.hbm [resolvable:$true] %s292
          %s294 = sshll.u32 [#allocation8], 4
          %s295 = int_to_ptr.vmem [resolvable:$true] %s294
          %300 = dma.hbm_to_vmem [thread:$0]  %s293, 512, %s295, [#allocation7], 256, 256, 16
        $region40: #{tpu_custom_call.1} parent=11 // pred_fallthru
          _
        // Predicated region
        $region41: #{tpu_custom_call.1} parent=11 // pred_check
          %p301 = pneg %p217
        $region42: #{tpu_custom_call.1} parent=11 // pred_check_branch
          %303 = sbr.rel (%p301) target = $region44
        $region43: #{tpu_custom_call.1} parent=11 // pred_region
          %305 = vsyncadd [#allocation10], 0
          %s306 = sshll.u32 %s8, 4
          %s307 = int_to_ptr.hbm [resolvable:$true] %s306
          %s308 = sshll.u32 [#allocation9], 4
          %s309 = int_to_ptr.vmem [resolvable:$true] %s308
          %314 = dma.hbm_to_vmem [thread:$0]  %s307, 512, %s309, [#allocation10], 256, 256, 16
        $region44: #{tpu_custom_call.1} parent=11 // pred_fallthru
          _
      $region12: #{tpu_custom_call.1} parent=5 // pred_fallthru
        _
      %p315 = scmp.lt.s32.totalorder %s23, 2
      // Predicated region
      $region45: #{tpu_custom_call.1} parent=5 // pred_check
        %p316 = pneg %p315
      $region46: #{tpu_custom_call.1} parent=5 // pred_check_branch
        %318 = sbr.rel (%p316) target = $region48
      $region47: #{tpu_custom_call.1} parent=5 // pred_region
        // Predicated region
        $region49: #{tpu_custom_call.1} parent=47 // pred_check
          %p319 = pneg %p43
        $region50: #{tpu_custom_call.1} parent=47 // pred_check_branch
          %321 = sbr.rel (%p319) target = $region52
        $region51: #{tpu_custom_call.1} parent=47 // pred_region
          %s322 = sand.u32 %s33, 1
          %s323 = scalar_lea.sflag [#allocation4], %s322
          %s324 = sand.u32 %s33, 1
          %s325 = smul.addr %s324, 32
          %s326 = scalar_lea.vmem [#allocation3], %s325
          %328 = vsyncadd %s323, 0
          %s329 = smul.addr %s23, 4
          %s330 = smul.addr %s329, 8
          %s331 = scalar_lea.hbm %s0, %s330
          %s332 = sshll.u32 %s331, 4
          %s333 = int_to_ptr.hbm [resolvable:$true] %s332
          %s334 = sshll.u32 %s326, 4
          %s335 = int_to_ptr.vmem [resolvable:$true] %s334
          %340 = dma.hbm_to_vmem [thread:$0]  %s333, 512, %s335, %s323, 256, 256, 16
        $region52: #{tpu_custom_call.1} parent=47 // pred_fallthru
          _
      $region48: #{tpu_custom_call.1} parent=5 // pred_fallthru
        _
      %p341 = scmp.le.s32.totalorder 1, %s23
      %p342 = scmp.lt.s32.totalorder %s23, 3
      %p343 = pnand %p341, %p342
      %p344 = pneg %p343
      // Predicated region
      $region53: #{tpu_custom_call.1} parent=5 // pred_check
        _
      $region54: #{tpu_custom_call.1} parent=5 // pred_check_branch
        %346 = sbr.rel (%p343) target = $region56
      $region55: #{tpu_custom_call.1} parent=5 // pred_region
        %s347 = ssub.s32 %s23, 1
        %s348 = sand.u32 %s36, 1
        %s349 = scalar_lea.sflag [#allocation4], %s348
        %s350 = sand.u32 %s36, 1
        %s351 = smul.addr %s350, 32
        %s352 = scalar_lea.vmem [#allocation3], %s351
        // Predicated region
        $region57: #{tpu_custom_call.1} parent=55 // pred_check
          %p353 = pneg %p49
        $region58: #{tpu_custom_call.1} parent=55 // pred_check_branch
          %355 = sbr.rel (%p353) target = $region60
        $region59: #{tpu_custom_call.1} parent=55 // pred_region
          %357 = dma.done %s349, 512
        $region60: #{tpu_custom_call.1} parent=55 // pred_fallthru
          _
        // Predicated region
        $region61: #{tpu_custom_call.1} parent=55 // pred_check
          %p358 = pneg %p154
        $region62: #{tpu_custom_call.1} parent=55 // pred_check_branch
          %360 = sbr.rel (%p358) target = $region64
        $region63: #{tpu_custom_call.1} parent=55 // pred_region
          %362 = dma.done [#allocation7], 512
        $region64: #{tpu_custom_call.1} parent=55 // pred_fallthru
          _
        // Predicated region
        $region65: #{tpu_custom_call.1} parent=55 // pred_check
          %p363 = pneg %p196
        $region66: #{tpu_custom_call.1} parent=55 // pred_check_branch
          %365 = sbr.rel (%p363) target = $region68
        $region67: #{tpu_custom_call.1} parent=55 // pred_region
          %367 = dma.done [#allocation7], 512
        $region68: #{tpu_custom_call.1} parent=55 // pred_fallthru
          _
        // Predicated region
        $region69: #{tpu_custom_call.1} parent=55 // pred_check
          %p368 = pneg %p217
        $region70: #{tpu_custom_call.1} parent=55 // pred_check_branch
          %370 = sbr.rel (%p368) target = $region72
        $region71: #{tpu_custom_call.1} parent=55 // pred_region
          %372 = dma.done [#allocation10], 512
        $region72: #{tpu_custom_call.1} parent=55 // pred_fallthru
          _
        %s373 = sand.u32 %s36, 1
        %s374 = scalar_lea.sflag [#allocation4], %s373
        %s375 = sand.u32 %s36, 1
        %s376 = smul.addr %s375, 32
        %s377 = scalar_lea.vmem [#allocation3], %s376
        %p378 = pneg %p49
        %p379 = pneg %p46
        %p380 = pneg %p70
        %p381 = pneg %p67
        %p382 = pneg %p91
        %p383 = pneg %p88
        %p384 = pneg %p112
        %p385 = pneg %p109
        %p386 = pneg %p133
        %p387 = pneg %p130
        %p388 = pneg %p154
        %p389 = pneg %p151
        %p390 = pneg %p175
        %p391 = pneg %p172
        %p392 = pneg %p196
        %p393 = pneg %p193
        %p394 = pneg %p217
        %p395 = pneg %p214
        %p396 = pneg %p243
        %p397 = pneg %p240
        %s398 = sand.u32 %s230, 1
        %s399 = scalar_lea.sflag [#allocation5], %s398
        %s400 = sand.u32 %s230, 1
        %s401 = smul.addr %s400, 16
        %s402 = scalar_lea.vmem [#allocation11], %s401
        %v403 = vld [vmem:[%s1] sm:$0xff]
        %v404 = vld [vmem:[%s1 + $0x8] sm:$0xff]
        %v405 = vld [vmem:[%s352] sm:$0xff]
        %v406 = vld [vmem:[%s352 + $0x8] sm:$0xff]
        %v407 = vld [vmem:[%s352 + $0x10] sm:$0xff]
        %v408 = vld [vmem:[%s352 + $0x18] sm:$0xff]
        %v409 = vld [vmem:[%s2] sm:$0xff]
        %v410 = vld [vmem:[%s2 + $0x8] sm:$0xff]
        %412 = vset.pattern.permute.xlu0 0
        %413 = vperm.xlu0 %412, %v409
        %v414 = vpop.permute.xlu0 %413
        %417 = vset.pattern.permute.xlu0 0
        %418 = vperm.xlu0 %417, %v410
        %v419 = vpop.permute.xlu0 %418
        %vm421 = vcmask 130048
        %v423 = vsel %vm421, %v403, 0
        %v426 = vsel %vm421, %v404, 0
        %428 = vmatpush.msra.mxu0 0.0
        %429 = vmatpush.msra.mxu0 0.0
        %430 = vmatpush.msra.mxu0 0.0
        %431 = vmatpush.msra.mxu0 0.0
        %432 = vmatpush.msra.mxu0 0.0
        %433 = vmatpush.msra.mxu0 0.0
        %434 = vmatpush.msra.mxu0 0.0
        %435 = vmatpush.msra.mxu0 0.0
        %436 = vmatpush.msra.mxu0 0.0
        %437 = vmatpush.msra.mxu0 0.0
        %438 = vmatpush.msra.mxu0 0.0
        %439 = vmatpush.msra.mxu0 0.0
        %440 = vmatpush.msra.mxu0 0.0
        %441 = vmatpush.msra.mxu0 0.0
        %442 = vmatpush.msra.mxu0 %v407
        %443 = vmatpush.msra.mxu0 %v405
        %444 = vmatmul.f32.gmra.mxu0 %v423
        %v445 = vpop.f32.mrf.mxu0
        %v446 = vadd.f32 %v414, %v445
        %447 = vmatmul.f32.gmra.mxu0 %v426
        %v448 = vpop.f32.mrf.mxu0
        %v449 = vadd.f32 %v419, %v448
        %450 = vdwg.mxu0
        %451 = vmatpush.msra.mxu0 0.0
        %452 = vmatpush.msra.mxu0 0.0
        %453 = vmatpush.msra.mxu0 0.0
        %454 = vmatpush.msra.mxu0 0.0
        %455 = vmatpush.msra.mxu0 0.0
        %456 = vmatpush.msra.mxu0 0.0
        %457 = vmatpush.msra.mxu0 0.0
        %458 = vmatpush.msra.mxu0 0.0
        %459 = vmatpush.msra.mxu0 0.0
        %460 = vmatpush.msra.mxu0 0.0
        %461 = vmatpush.msra.mxu0 0.0
        %462 = vmatpush.msra.mxu0 0.0
        %463 = vmatpush.msra.mxu0 0.0
        %464 = vmatpush.msra.mxu0 0.0
        %465 = vmatpush.msra.mxu0 %v408
        %466 = vmatpush.msra.mxu0 %v406
        %467 = vmatmul.f32.gmra.mxu0 %v423
        %v468 = vpop.f32.mrf.mxu0
        %v469 = vadd.f32 %v414, %v468
        %470 = vmatmul.f32.gmra.mxu0 %v426
        %v471 = vpop.f32.mrf.mxu0
        %v472 = vadd.f32 %v419, %v471
        %473 = vdwg.mxu0
        %v474 = vmax.f32 %v446, 0.0
        %v475 = vmax.f32 %v469, 0.0
        %v476 = vmax.f32 %v449, 0.0
        %v477 = vmax.f32 %v472, 0.0
        %478 = vst [vmem:[%s402] sm:$0xff] %v474
        %479 = vst [vmem:[%s402 + $0x8] sm:$0xff] %v475
        %480 = vrot.lane.b32.xlu0 %v474, 17
        %v481 = vpop.permute.xlu0 %480
        %482 = vrot.lane.b32.xlu0 %v476, 17
        %v483 = vpop.permute.xlu0 %482
        %484 = vrot.lane.b32.xlu0 %v475, 17
        %v485 = vpop.permute.xlu0 %484
        %486 = vrot.lane.b32.xlu0 %v477, 17
        %v487 = vpop.permute.xlu0 %486
        %v488 = vlaneseq
        %v489 = vand.u32 %v488, 127
        %vm490 = vcmp.lt.s32.totalorder %v489, 17
        %v491 = vsel %vm490, %v481, %v485
        %v492 = vsel %vm490, %v483, %v487
        %v493 = vsel %vm490, %v485, %v481
        %v494 = vsel %vm490, %v487, %v483
        %v495 = vld [vmem:[#allocation8] ss:$8 sm:$0x3]
        %v497 = vperm.slane %v495, 0
        %v498 = vperm.slane %v495, 1
        %v501 = vmul.f32 %v493, %v497
        %v502 = vmul.f32 %v491, %v498
        %v503 = vmul.f32 %v494, %v497
        %v504 = vmul.f32 %v492, %v498
        %505 = vst [vmem:[#allocation2] sm:$0xff] %v501
        %506 = vst [vmem:[#allocation2 + $0x8] sm:$0xff] %v502
        %507 = vst [vmem:[#allocation2 + $0x10] sm:$0xff] %v503
        %508 = vst [vmem:[#allocation2 + $0x18] sm:$0xff] %v504
        %509 = vrot.lane.b32.xlu0 %v474, 16
        %v510 = vpop.permute.xlu0 %509
        %511 = vrot.lane.b32.xlu0 %v476, 16
        %v512 = vpop.permute.xlu0 %511
        %513 = vrot.lane.b32.xlu0 %v475, 16
        %v514 = vpop.permute.xlu0 %513
        %515 = vrot.lane.b32.xlu0 %v477, 16
        %v516 = vpop.permute.xlu0 %515
        %vm517 = vcmp.lt.s32.totalorder %v489, 16
        %v518 = vsel %vm517, %v510, %v514
        %v519 = vsel %vm517, %v512, %v516
        %v520 = vsel %vm517, %v514, %v510
        %v521 = vsel %vm517, %v516, %v512
        %s522 = scalar_lea.vmem [#allocation8], 1
        %v523 = vld [vmem:[%s522] ss:$8 sm:$0x3]
        %v525 = vperm.slane %v523, 0
        %v526 = vperm.slane %v523, 1
        %v529 = vmul.f32 %v520, %v525
        %v530 = vmul.f32 %v518, %v526
        %v531 = vmul.f32 %v521, %v525
        %v532 = vmul.f32 %v519, %v526
        %533 = vst [vmem:[#allocation2 + $0x20] sm:$0xff] %v529
        %534 = vst [vmem:[#allocation2 + $0x28] sm:$0xff] %v530
        %535 = vst [vmem:[#allocation2 + $0x30] sm:$0xff] %v531
        %536 = vst [vmem:[#allocation2 + $0x38] sm:$0xff] %v532
        %537 = vrot.lane.b32.xlu0 %v474, 15
        %v538 = vpop.permute.xlu0 %537
        %539 = vrot.lane.b32.xlu0 %v476, 15
        %v540 = vpop.permute.xlu0 %539
        %541 = vrot.lane.b32.xlu0 %v475, 15
        %v542 = vpop.permute.xlu0 %541
        %543 = vrot.lane.b32.xlu0 %v477, 15
        %v544 = vpop.permute.xlu0 %543
        %vm545 = vcmp.lt.s32.totalorder %v489, 15
        %v546 = vsel %vm545, %v538, %v542
        %v547 = vsel %vm545, %v540, %v544
        %v548 = vsel %vm545, %v542, %v538
        %v549 = vsel %vm545, %v544, %v540
        %s550 = scalar_lea.vmem [#allocation8], 2
        %v551 = vld [vmem:[%s550] ss:$8 sm:$0x3]
        %v553 = vperm.slane %v551, 0
        %v554 = vperm.slane %v551, 1
        %v557 = vmul.f32 %v548, %v553
        %v558 = vmul.f32 %v546, %v554
        %v559 = vmul.f32 %v549, %v553
        %v560 = vmul.f32 %v547, %v554
        %561 = vst [vmem:[#allocation2 + $0x40] sm:$0xff] %v557
        %562 = vst [vmem:[#allocation2 + $0x48] sm:$0xff] %v558
        %563 = vst [vmem:[#allocation2 + $0x50] sm:$0xff] %v559
        %564 = vst [vmem:[#allocation2 + $0x58] sm:$0xff] %v560
        %565 = vrot.lane.b32.xlu0 %v474, 1
        %v566 = vpop.permute.xlu0 %565
        %567 = vrot.lane.b32.xlu0 %v476, 1
        %v568 = vpop.permute.xlu0 %567
        %569 = vrot.lane.b32.xlu0 %v475, 1
        %v570 = vpop.permute.xlu0 %569
        %571 = vrot.lane.b32.xlu0 %v477, 1
        %v572 = vpop.permute.xlu0 %571
        %vm573 = vcmp.lt.s32.totalorder %v489, 1
        %v574 = vsel %vm573, %v566, %v570
        %v575 = vsel %vm573, %v568, %v572
        %v576 = vsel %vm573, %v570, %v566
        %v577 = vsel %vm573, %v572, %v568
        %s578 = scalar_lea.vmem [#allocation8], 3
        %v579 = vld [vmem:[%s578] ss:$8 sm:$0x3]
        %v581 = vperm.slane %v579, 0
        %v582 = vperm.slane %v579, 1
        %v585 = vmul.f32 %v576, %v581
        %v586 = vmul.f32 %v574, %v582
        %v587 = vmul.f32 %v577, %v581
        %v588 = vmul.f32 %v575, %v582
        %589 = vst [vmem:[#allocation2 + $0x60] sm:$0xff] %v585
        %590 = vst [vmem:[#allocation2 + $0x68] sm:$0xff] %v586
        %591 = vst [vmem:[#allocation2 + $0x70] sm:$0xff] %v587
        %592 = vst [vmem:[#allocation2 + $0x78] sm:$0xff] %v588
        %593 = vst [vmem:[#allocation2 + $0x80] sm:$0xff] %v474
        %594 = vst [vmem:[#allocation2 + $0x88] sm:$0xff] %v475
        %595 = vst [vmem:[#allocation2 + $0x90] sm:$0xff] %v476
        %596 = vst [vmem:[#allocation2 + $0x98] sm:$0xff] %v477
        %597 = vrot.lane.b32.xlu0 %v474, 127
        %v598 = vpop.permute.xlu0 %597
        %599 = vrot.lane.b32.xlu0 %v476, 127
        %v600 = vpop.permute.xlu0 %599
        %601 = vrot.lane.b32.xlu0 %v475, 127
        %v602 = vpop.permute.xlu0 %601
        %603 = vrot.lane.b32.xlu0 %v477, 127
        %v604 = vpop.permute.xlu0 %603
        %vm605 = vcmp.lt.s32.totalorder %v489, 127
        %v606 = vsel %vm605, %v598, %v602
        %v607 = vsel %vm605, %v600, %v604
        %v608 = vsel %vm605, %v602, %v598
        %v609 = vsel %vm605, %v604, %v600
        %s610 = scalar_lea.vmem [#allocation8], 5
        %v611 = vld [vmem:[%s610] ss:$8 sm:$0x3]
        %v613 = vperm.slane %v611, 0
        %v614 = vperm.slane %v611, 1
        %v617 = vmul.f32 %v606, %v613
        %v618 = vmul.f32 %v608, %v614
        %v619 = vmul.f32 %v607, %v613
        %v620 = vmul.f32 %v609, %v614
        %621 = vst [vmem:[#allocation2 + $0xa0] sm:$0xff] %v617
        %622 = vst [vmem:[#allocation2 + $0xa8] sm:$0xff] %v618
        %623 = vst [vmem:[#allocation2 + $0xb0] sm:$0xff] %v619
        %624 = vst [vmem:[#allocation2 + $0xb8] sm:$0xff] %v620
        %625 = vrot.lane.b32.xlu0 %v474, 113
        %v626 = vpop.permute.xlu0 %625
        %627 = vrot.lane.b32.xlu0 %v476, 113
        %v628 = vpop.permute.xlu0 %627
        %629 = vrot.lane.b32.xlu0 %v475, 113
        %v630 = vpop.permute.xlu0 %629
        %631 = vrot.lane.b32.xlu0 %v477, 113
        %v632 = vpop.permute.xlu0 %631
        %vm633 = vcmp.lt.s32.totalorder %v489, 113
        %v634 = vsel %vm633, %v626, %v630
        %v635 = vsel %vm633, %v628, %v632
        %v636 = vsel %vm633, %v630, %v626
        %v637 = vsel %vm633, %v632, %v628
        %s638 = scalar_lea.vmem [#allocation8], 6
        %v639 = vld [vmem:[%s638] ss:$8 sm:$0x3]
        %v641 = vperm.slane %v639, 0
        %v642 = vperm.slane %v639, 1
        %v645 = vmul.f32 %v634, %v641
        %v646 = vmul.f32 %v636, %v642
        %v647 = vmul.f32 %v635, %v641
        %v648 = vmul.f32 %v637, %v642
        %649 = vst [vmem:[#allocation2 + $0xc0] sm:$0xff] %v645
        %650 = vst [vmem:[#allocation2 + $0xc8] sm:$0xff] %v646
        %651 = vst [vmem:[#allocation2 + $0xd0] sm:$0xff] %v647
        %652 = vst [vmem:[#allocation2 + $0xd8] sm:$0xff] %v648
        %653 = vrot.lane.b32.xlu0 %v474, 112
        %v654 = vpop.permute.xlu0 %653
        %655 = vrot.lane.b32.xlu0 %v476, 112
        %v656 = vpop.permute.xlu0 %655
        %657 = vrot.lane.b32.xlu0 %v475, 112
        %v658 = vpop.permute.xlu0 %657
        %659 = vrot.lane.b32.xlu0 %v477, 112
        %v660 = vpop.permute.xlu0 %659
        %vm661 = vcmp.lt.s32.totalorder %v489, 112
        %v662 = vsel %vm661, %v654, %v658
        %v663 = vsel %vm661, %v656, %v660
        %v664 = vsel %vm661, %v658, %v654
        %v665 = vsel %vm661, %v660, %v656
        %s666 = scalar_lea.vmem [#allocation8], 7
        %v667 = vld [vmem:[%s666] ss:$8 sm:$0x3]
        %v669 = vperm.slane %v667, 0
        %v670 = vperm.slane %v667, 1
        %v673 = vmul.f32 %v662, %v669
        %v674 = vmul.f32 %v664, %v670
        %v675 = vmul.f32 %v663, %v669
        %v676 = vmul.f32 %v665, %v670
        %677 = vst [vmem:[#allocation2 + $0xe0] sm:$0xff] %v673
        %678 = vst [vmem:[#allocation2 + $0xe8] sm:$0xff] %v674
        %679 = vst [vmem:[#allocation2 + $0xf0] sm:$0xff] %v675
        %680 = vst [vmem:[#allocation2 + $0xf8] sm:$0xff] %v676
        %681 = vrot.lane.b32.xlu0 %v474, 111
        %v682 = vpop.permute.xlu0 %681
        %683 = vrot.lane.b32.xlu0 %v476, 111
        %v684 = vpop.permute.xlu0 %683
        %685 = vrot.lane.b32.xlu0 %v475, 111
        %v686 = vpop.permute.xlu0 %685
        %687 = vrot.lane.b32.xlu0 %v477, 111
        %v688 = vpop.permute.xlu0 %687
        %vm689 = vcmp.lt.s32.totalorder %v489, 111
        %v690 = vsel %vm689, %v682, %v686
        %v691 = vsel %vm689, %v684, %v688
        %v692 = vsel %vm689, %v686, %v682
        %v693 = vsel %vm689, %v688, %v684
        %s694 = scalar_lea.vmem [#allocation8], 16
        %v695 = vld [vmem:[%s694] ss:$8 sm:$0x3]
        %v697 = vperm.slane %v695, 0
        %v698 = vperm.slane %v695, 1
        %v701 = vmul.f32 %v690, %v697
        %v702 = vmul.f32 %v692, %v698
        %v703 = vmul.f32 %v691, %v697
        %v704 = vmul.f32 %v693, %v698
        %705 = vst [vmem:[#allocation2 + $0x100] sm:$0xff] %v701
        %706 = vst [vmem:[#allocation2 + $0x108] sm:$0xff] %v702
        %707 = vst [vmem:[#allocation2 + $0x110] sm:$0xff] %v703
        %708 = vst [vmem:[#allocation2 + $0x118] sm:$0xff] %v704
        %v709 = vld [vmem:[%s3] sm:$0xff]
        %v710 = vld [vmem:[%s3 + $0x8] sm:$0xff]
        %v711 = vld [vmem:[%s3 + $0x10] sm:$0xff]
        %v712 = vld [vmem:[%s3 + $0x18] sm:$0xff]
        %v713 = vld [vmem:[#allocation2] sm:$0xff]
        %v714 = vld [vmem:[#allocation2 + $0x8] sm:$0xff]
        %v715 = vld [vmem:[#allocation2 + $0x10] sm:$0xff]
        %v716 = vld [vmem:[#allocation2 + $0x18] sm:$0xff]
        %v717 = vld [vmem:[#allocation2 + $0x20] sm:$0xff]
        %v718 = vld [vmem:[#allocation2 + $0x28] sm:$0xff]
        %v719 = vld [vmem:[#allocation2 + $0x30] sm:$0xff]
        %v720 = vld [vmem:[#allocation2 + $0x38] sm:$0xff]
        %v721 = vld [vmem:[#allocation2 + $0x40] sm:$0xff]
        %v722 = vld [vmem:[#allocation2 + $0x48] sm:$0xff]
        %v723 = vld [vmem:[#allocation2 + $0x50] sm:$0xff]
        %v724 = vld [vmem:[#allocation2 + $0x58] sm:$0xff]
        %v725 = vld [vmem:[#allocation2 + $0x60] sm:$0xff]
        %v726 = vld [vmem:[#allocation2 + $0x68] sm:$0xff]
        %v727 = vld [vmem:[#allocation2 + $0x70] sm:$0xff]
        %v728 = vld [vmem:[#allocation2 + $0x78] sm:$0xff]
        %v729 = vld [vmem:[#allocation2 + $0x80] sm:$0xff]
        %v730 = vld [vmem:[#allocation2 + $0x88] sm:$0xff]
        %v731 = vld [vmem:[#allocation2 + $0x90] sm:$0xff]
        %v732 = vld [vmem:[#allocation2 + $0x98] sm:$0xff]
        %v733 = vld [vmem:[#allocation2 + $0xa0] sm:$0xff]
        %v734 = vld [vmem:[#allocation2 + $0xa8] sm:$0xff]
        %v735 = vld [vmem:[#allocation2 + $0xb0] sm:$0xff]
        %v736 = vld [vmem:[#allocation2 + $0xb8] sm:$0xff]
        %v737 = vld [vmem:[#allocation2 + $0xc0] sm:$0xff]
        %v738 = vld [vmem:[#allocation2 + $0xc8] sm:$0xff]
        %v739 = vld [vmem:[#allocation2 + $0xd0] sm:$0xff]
        %v740 = vld [vmem:[#allocation2 + $0xd8] sm:$0xff]
        %v741 = vld [vmem:[#allocation2 + $0xe0] sm:$0xff]
        %v742 = vld [vmem:[#allocation2 + $0xe8] sm:$0xff]
        %v743 = vld [vmem:[#allocation2 + $0xf0] sm:$0xff]
        %v744 = vld [vmem:[#allocation2 + $0xf8] sm:$0xff]
        %v745 = vld [vmem:[#allocation2 + $0x100] sm:$0xff]
        %v746 = vld [vmem:[#allocation2 + $0x108] sm:$0xff]
        %v747 = vld [vmem:[#allocation2 + $0x110] sm:$0xff]
        %v748 = vld [vmem:[#allocation2 + $0x118] sm:$0xff]
        %v749 = vld [vmem:[%s4] sm:$0xff]
        %v750 = vld [vmem:[%s4 + $0x8] sm:$0xff]
        %752 = vset.pattern.permute.xlu0 0
        %753 = vperm.xlu0 %752, %v749
        %v754 = vpop.permute.xlu0 %753
        %757 = vset.pattern.permute.xlu0 0
        %758 = vperm.xlu0 %757, %v750
        %v759 = vpop.permute.xlu0 %758
        %v762 = vsel %vm421, %v710, 0
        %v765 = vsel %vm421, %v712, 0
        %767 = vmatpush.msra.mxu0 %v743
        %768 = vmatpush.msra.mxu0 %v741
        %769 = vmatpush.msra.mxu0 %v739
        %770 = vmatpush.msra.mxu0 %v737
        %771 = vmatpush.msra.mxu0 %v735
        %772 = vmatpush.msra.mxu0 %v733
        %773 = vmatpush.msra.mxu0 %v731
        %774 = vmatpush.msra.mxu0 %v729
        %775 = vmatpush.msra.mxu0 %v727
        %776 = vmatpush.msra.mxu0 %v725
        %777 = vmatpush.msra.mxu0 %v723
        %778 = vmatpush.msra.mxu0 %v721
        %779 = vmatpush.msra.mxu0 %v719
        %780 = vmatpush.msra.mxu0 %v717
        %781 = vmatpush.msra.mxu0 %v715
        %782 = vmatpush.msra.mxu0 %v713
        %783 = vmatmul.f32.gmra.mxu0 %v709
        %v784 = vpop.f32.mrf.mxu0
        %v785 = vadd.f32 %v754, %v784
        %786 = vmatmul.f32.gmra.mxu0 %v711
        %v787 = vpop.f32.mrf.mxu0
        %v788 = vadd.f32 %v759, %v787
        %789 = vdwg.mxu0
        %790 = vmatpush.msra.mxu0 0.0
        %791 = vmatpush.msra.mxu0 0.0
        %792 = vmatpush.msra.mxu0 0.0
        %793 = vmatpush.msra.mxu0 0.0
        %794 = vmatpush.msra.mxu0 0.0
        %795 = vmatpush.msra.mxu0 0.0
        %796 = vmatpush.msra.mxu0 0.0
        %797 = vmatpush.msra.mxu0 0.0
        %798 = vmatpush.msra.mxu0 0.0
        %799 = vmatpush.msra.mxu0 0.0
        %800 = vmatpush.msra.mxu0 0.0
        %801 = vmatpush.msra.mxu0 0.0
        %802 = vmatpush.msra.mxu0 0.0
        %803 = vmatpush.msra.mxu0 0.0
        %804 = vmatpush.msra.mxu0 %v747
        %805 = vmatpush.msra.mxu0 %v745
        %806 = vmatmul.f32.gmra.mxu0 %v762
        %v807 = vpop.f32.mrf.mxu0
        %v808 = vadd.f32 %v785, %v807
        %809 = vmatmul.f32.gmra.mxu0 %v765
        %v810 = vpop.f32.mrf.mxu0
        %v811 = vadd.f32 %v788, %v810
        %812 = vdwg.mxu0
        %813 = vmatpush.msra.mxu0 %v744
        %814 = vmatpush.msra.mxu0 %v742
        %815 = vmatpush.msra.mxu0 %v740
        %816 = vmatpush.msra.mxu0 %v738
        %817 = vmatpush.msra.mxu0 %v736
        %818 = vmatpush.msra.mxu0 %v734
        %819 = vmatpush.msra.mxu0 %v732
        %820 = vmatpush.msra.mxu0 %v730
        %821 = vmatpush.msra.mxu0 %v728
        %822 = vmatpush.msra.mxu0 %v726
        %823 = vmatpush.msra.mxu0 %v724
        %824 = vmatpush.msra.mxu0 %v722
        %825 = vmatpush.msra.mxu0 %v720
        %826 = vmatpush.msra.mxu0 %v718
        %827 = vmatpush.msra.mxu0 %v716
        %828 = vmatpush.msra.mxu0 %v714
        %829 = vmatmul.f32.gmra.mxu0 %v709
        %v830 = vpop.f32.mrf.mxu0
        %v831 = vadd.f32 %v754, %v830
        %832 = vmatmul.f32.gmra.mxu0 %v711
        %v833 = vpop.f32.mrf.mxu0
        %v834 = vadd.f32 %v759, %v833
        %835 = vdwg.mxu0
        %836 = vmatpush.msra.mxu0 0.0
        %837 = vmatpush.msra.mxu0 0.0
        %838 = vmatpush.msra.mxu0 0.0
        %839 = vmatpush.msra.mxu0 0.0
        %840 = vmatpush.msra.mxu0 0.0
        %841 = vmatpush.msra.mxu0 0.0
        %842 = vmatpush.msra.mxu0 0.0
        %843 = vmatpush.msra.mxu0 0.0
        %844 = vmatpush.msra.mxu0 0.0
        %845 = vmatpush.msra.mxu0 0.0
        %846 = vmatpush.msra.mxu0 0.0
        %847 = vmatpush.msra.mxu0 0.0
        %848 = vmatpush.msra.mxu0 0.0
        %849 = vmatpush.msra.mxu0 0.0
        %850 = vmatpush.msra.mxu0 %v748
        %851 = vmatpush.msra.mxu0 %v746
        %852 = vmatmul.f32.gmra.mxu0 %v762
        %v853 = vpop.f32.mrf.mxu0
        %v854 = vadd.f32 %v831, %v853
        %855 = vmatmul.f32.gmra.mxu0 %v765
        %v856 = vpop.f32.mrf.mxu0
        %v857 = vadd.f32 %v834, %v856
        %858 = vdwg.mxu0
        %v859 = vmax.f32 %v808, 0.0
        %v860 = vmax.f32 %v854, 0.0
        %v861 = vmax.f32 %v811, 0.0
        %v862 = vmax.f32 %v857, 0.0
        %863 = vrot.lane.b32.xlu0 %v859, 34
        %v864 = vpop.permute.xlu0 %863
        %865 = vrot.lane.b32.xlu0 %v861, 34
        %v866 = vpop.permute.xlu0 %865
        %867 = vrot.lane.b32.xlu0 %v860, 34
        %v868 = vpop.permute.xlu0 %867
        %869 = vrot.lane.b32.xlu0 %v862, 34
        %v870 = vpop.permute.xlu0 %869
        %vm871 = vcmp.lt.s32.totalorder %v489, 34
        %v872 = vsel %vm871, %v864, %v868
        %v873 = vsel %vm871, %v866, %v870
        %v874 = vsel %vm871, %v868, %v864
        %v875 = vsel %vm871, %v870, %v866
        %v876 = vld [vmem:[#allocation9] ss:$8 sm:$0x3]
        %v878 = vperm.slane %v876, 0
        %v879 = vperm.slane %v876, 1
        %v882 = vmul.f32 %v874, %v878
        %v883 = vmul.f32 %v872, %v879
        %v884 = vmul.f32 %v875, %v878
        %v885 = vmul.f32 %v873, %v879
        %886 = vst [vmem:[#allocation2] sm:$0xff] %v882
        %887 = vst [vmem:[#allocation2 + $0x8] sm:$0xff] %v883
        %888 = vst [vmem:[#allocation2 + $0x10] sm:$0xff] %v884
        %889 = vst [vmem:[#allocation2 + $0x18] sm:$0xff] %v885
        %890 = vrot.lane.b32.xlu0 %v859, 32
        %v891 = vpop.permute.xlu0 %890
        %892 = vrot.lane.b32.xlu0 %v861, 32
        %v893 = vpop.permute.xlu0 %892
        %894 = vrot.lane.b32.xlu0 %v860, 32
        %v895 = vpop.permute.xlu0 %894
        %896 = vrot.lane.b32.xlu0 %v862, 32
        %v897 = vpop.permute.xlu0 %896
        %vm898 = vcmp.lt.s32.totalorder %v489, 32
        %v899 = vsel %vm898, %v891, %v895
        %v900 = vsel %vm898, %v893, %v897
        %v901 = vsel %vm898, %v895, %v891
        %v902 = vsel %vm898, %v897, %v893
        %s903 = scalar_lea.vmem [#allocation9], 1
        %v904 = vld [vmem:[%s903] ss:$8 sm:$0x3]
        %v906 = vperm.slane %v904, 0
        %v907 = vperm.slane %v904, 1
        %v910 = vmul.f32 %v901, %v906
        %v911 = vmul.f32 %v899, %v907
        %v912 = vmul.f32 %v902, %v906
        %v913 = vmul.f32 %v900, %v907
        %914 = vst [vmem:[#allocation2 + $0x20] sm:$0xff] %v910
        %915 = vst [vmem:[#allocation2 + $0x28] sm:$0xff] %v911
        %916 = vst [vmem:[#allocation2 + $0x30] sm:$0xff] %v912
        %917 = vst [vmem:[#allocation2 + $0x38] sm:$0xff] %v913
        %918 = vrot.lane.b32.xlu0 %v859, 30
        %v919 = vpop.permute.xlu0 %918
        %920 = vrot.lane.b32.xlu0 %v861, 30
        %v921 = vpop.permute.xlu0 %920
        %922 = vrot.lane.b32.xlu0 %v860, 30
        %v923 = vpop.permute.xlu0 %922
        %924 = vrot.lane.b32.xlu0 %v862, 30
        %v925 = vpop.permute.xlu0 %924
        %vm926 = vcmp.lt.s32.totalorder %v489, 30
        %v927 = vsel %vm926, %v919, %v923
        %v928 = vsel %vm926, %v921, %v925
        %v929 = vsel %vm926, %v923, %v919
        %v930 = vsel %vm926, %v925, %v921
        %s931 = scalar_lea.vmem [#allocation9], 2
        %v932 = vld [vmem:[%s931] ss:$8 sm:$0x3]
        %v934 = vperm.slane %v932, 0
        %v935 = vperm.slane %v932, 1
        %v938 = vmul.f32 %v929, %v934
        %v939 = vmul.f32 %v927, %v935
        %v940 = vmul.f32 %v930, %v934
        %v941 = vmul.f32 %v928, %v935
        %942 = vst [vmem:[#allocation2 + $0x40] sm:$0xff] %v938
        %943 = vst [vmem:[#allocation2 + $0x48] sm:$0xff] %v939
        %944 = vst [vmem:[#allocation2 + $0x50] sm:$0xff] %v940
        %945 = vst [vmem:[#allocation2 + $0x58] sm:$0xff] %v941
        %946 = vrot.lane.b32.xlu0 %v859, 2
        %v947 = vpop.permute.xlu0 %946
        %948 = vrot.lane.b32.xlu0 %v861, 2
        %v949 = vpop.permute.xlu0 %948
        %950 = vrot.lane.b32.xlu0 %v860, 2
        %v951 = vpop.permute.xlu0 %950
        %952 = vrot.lane.b32.xlu0 %v862, 2
        %v953 = vpop.permute.xlu0 %952
        %vm954 = vcmp.lt.s32.totalorder %v489, 2
        %v955 = vsel %vm954, %v947, %v951
        %v956 = vsel %vm954, %v949, %v953
        %v957 = vsel %vm954, %v951, %v947
        %v958 = vsel %vm954, %v953, %v949
        %s959 = scalar_lea.vmem [#allocation9], 3
        %v960 = vld [vmem:[%s959] ss:$8 sm:$0x3]
        %v962 = vperm.slane %v960, 0
        %v963 = vperm.slane %v960, 1
        %v966 = vmul.f32 %v957, %v962
        %v967 = vmul.f32 %v955, %v963
        %v968 = vmul.f32 %v958, %v962
        %v969 = vmul.f32 %v956, %v963
        %970 = vst [vmem:[#allocation2 + $0x60] sm:$0xff] %v966
        %971 = vst [vmem:[#allocation2 + $0x68] sm:$0xff] %v967
        %972 = vst [vmem:[#allocation2 + $0x70] sm:$0xff] %v968
        %973 = vst [vmem:[#allocation2 + $0x78] sm:$0xff] %v969
        %974 = vst [vmem:[#allocation2 + $0x80] sm:$0xff] %v859
        %975 = vst [vmem:[#allocation2 + $0x88] sm:$0xff] %v860
        %976 = vst [vmem:[#allocation2 + $0x90] sm:$0xff] %v861
        %977 = vst [vmem:[#allocation2 + $0x98] sm:$0xff] %v862
        %978 = vrot.lane.b32.xlu0 %v859, 126
        %v979 = vpop.permute.xlu0 %978
        %980 = vrot.lane.b32.xlu0 %v861, 126
        %v981 = vpop.permute.xlu0 %980
        %982 = vrot.lane.b32.xlu0 %v860, 126
        %v983 = vpop.permute.xlu0 %982
        %984 = vrot.lane.b32.xlu0 %v862, 126
        %v985 = vpop.permute.xlu0 %984
        %vm986 = vcmp.lt.s32.totalorder %v489, 126
        %v987 = vsel %vm986, %v979, %v983
        %v988 = vsel %vm986, %v981, %v985
        %v989 = vsel %vm986, %v983, %v979
        %v990 = vsel %vm986, %v985, %v981
        %s991 = scalar_lea.vmem [#allocation9], 5
        %v992 = vld [vmem:[%s991] ss:$8 sm:$0x3]
        %v994 = vperm.slane %v992, 0
        %v995 = vperm.slane %v992, 1
        %v998 = vmul.f32 %v987, %v994
        %v999 = vmul.f32 %v989, %v995
        %v1000 = vmul.f32 %v988, %v994
        %v1001 = vmul.f32 %v990, %v995
        %1002 = vst [vmem:[#allocation2 + $0xa0] sm:$0xff] %v998
        %1003 = vst [vmem:[#allocation2 + $0xa8] sm:$0xff] %v999
        %1004 = vst [vmem:[#allocation2 + $0xb0] sm:$0xff] %v1000
        %1005 = vst [vmem:[#allocation2 + $0xb8] sm:$0xff] %v1001
        %1006 = vrot.lane.b32.xlu0 %v859, 98
        %v1007 = vpop.permute.xlu0 %1006
        %1008 = vrot.lane.b32.xlu0 %v861, 98
        %v1009 = vpop.permute.xlu0 %1008
        %1010 = vrot.lane.b32.xlu0 %v860, 98
        %v1011 = vpop.permute.xlu0 %1010
        %1012 = vrot.lane.b32.xlu0 %v862, 98
        %v1013 = vpop.permute.xlu0 %1012
        %vm1014 = vcmp.lt.s32.totalorder %v489, 98
        %v1015 = vsel %vm1014, %v1007, %v1011
        %v1016 = vsel %vm1014, %v1009, %v1013
        %v1017 = vsel %vm1014, %v1011, %v1007
        %v1018 = vsel %vm1014, %v1013, %v1009
        %s1019 = scalar_lea.vmem [#allocation9], 6
        %v1020 = vld [vmem:[%s1019] ss:$8 sm:$0x3]
        %v1022 = vperm.slane %v1020, 0
        %v1023 = vperm.slane %v1020, 1
        %v1026 = vmul.f32 %v1015, %v1022
        %v1027 = vmul.f32 %v1017, %v1023
        %v1028 = vmul.f32 %v1016, %v1022
        %v1029 = vmul.f32 %v1018, %v1023
        %1030 = vst [vmem:[#allocation2 + $0xc0] sm:$0xff] %v1026
        %1031 = vst [vmem:[#allocation2 + $0xc8] sm:$0xff] %v1027
        %1032 = vst [vmem:[#allocation2 + $0xd0] sm:$0xff] %v1028
        %1033 = vst [vmem:[#allocation2 + $0xd8] sm:$0xff] %v1029
        %1034 = vrot.lane.b32.xlu0 %v859, 96
        %v1035 = vpop.permute.xlu0 %1034
        %1036 = vrot.lane.b32.xlu0 %v861, 96
        %v1037 = vpop.permute.xlu0 %1036
        %1038 = vrot.lane.b32.xlu0 %v860, 96
        %v1039 = vpop.permute.xlu0 %1038
        %1040 = vrot.lane.b32.xlu0 %v862, 96
        %v1041 = vpop.permute.xlu0 %1040
        %vm1042 = vcmp.lt.s32.totalorder %v489, 96
        %v1043 = vsel %vm1042, %v1035, %v1039
        %v1044 = vsel %vm1042, %v1037, %v1041
        %v1045 = vsel %vm1042, %v1039, %v1035
        %v1046 = vsel %vm1042, %v1041, %v1037
        %s1047 = scalar_lea.vmem [#allocation9], 7
        %v1048 = vld [vmem:[%s1047] ss:$8 sm:$0x3]
        %v1050 = vperm.slane %v1048, 0
        %v1051 = vperm.slane %v1048, 1
        %v1054 = vmul.f32 %v1043, %v1050
        %v1055 = vmul.f32 %v1045, %v1051
        %v1056 = vmul.f32 %v1044, %v1050
        %v1057 = vmul.f32 %v1046, %v1051
        %1058 = vst [vmem:[#allocation2 + $0xe0] sm:$0xff] %v1054
        %1059 = vst [vmem:[#allocation2 + $0xe8] sm:$0xff] %v1055
        %1060 = vst [vmem:[#allocation2 + $0xf0] sm:$0xff] %v1056
        %1061 = vst [vmem:[#allocation2 + $0xf8] sm:$0xff] %v1057
        %1062 = vrot.lane.b32.xlu0 %v859, 94
        %v1063 = vpop.permute.xlu0 %1062
        %1064 = vrot.lane.b32.xlu0 %v861, 94
        %v1065 = vpop.permute.xlu0 %1064
        %1066 = vrot.lane.b32.xlu0 %v860, 94
        %v1067 = vpop.permute.xlu0 %1066
        %1068 = vrot.lane.b32.xlu0 %v862, 94
        %v1069 = vpop.permute.xlu0 %1068
        %vm1070 = vcmp.lt.s32.totalorder %v489, 94
        %v1071 = vsel %vm1070, %v1063, %v1067
        %v1072 = vsel %vm1070, %v1065, %v1069
        %v1073 = vsel %vm1070, %v1067, %v1063
        %v1074 = vsel %vm1070, %v1069, %v1065
        %s1075 = scalar_lea.vmem [#allocation9], 16
        %v1076 = vld [vmem:[%s1075] ss:$8 sm:$0x3]
        %v1078 = vperm.slane %v1076, 0
        %v1079 = vperm.slane %v1076, 1
        %v1082 = vmul.f32 %v1071, %v1078
        %v1083 = vmul.f32 %v1073, %v1079
        %v1084 = vmul.f32 %v1072, %v1078
        %v1085 = vmul.f32 %v1074, %v1079
        %1086 = vst [vmem:[#allocation2 + $0x100] sm:$0xff] %v1082
        %1087 = vst [vmem:[#allocation2 + $0x108] sm:$0xff] %v1083
        %1088 = vst [vmem:[#allocation2 + $0x110] sm:$0xff] %v1084
        %1089 = vst [vmem:[#allocation2 + $0x118] sm:$0xff] %v1085
        %v1090 = vld [vmem:[#allocation6] sm:$0xff]
        %v1091 = vld [vmem:[#allocation6 + $0x8] sm:$0xff]
        %v1092 = vld [vmem:[#allocation6 + $0x10] sm:$0xff]
        %v1093 = vld [vmem:[#allocation6 + $0x18] sm:$0xff]
        %v1094 = vld [vmem:[#allocation2] sm:$0xff]
        %v1095 = vld [vmem:[#allocation2 + $0x8] sm:$0xff]
        %v1096 = vld [vmem:[#allocation2 + $0x10] sm:$0xff]
        %v1097 = vld [vmem:[#allocation2 + $0x18] sm:$0xff]
        %v1098 = vld [vmem:[#allocation2 + $0x20] sm:$0xff]
        %v1099 = vld [vmem:[#allocation2 + $0x28] sm:$0xff]
        %v1100 = vld [vmem:[#allocation2 + $0x30] sm:$0xff]
        %v1101 = vld [vmem:[#allocation2 + $0x38] sm:$0xff]
        %v1102 = vld [vmem:[#allocation2 + $0x40] sm:$0xff]
        %v1103 = vld [vmem:[#allocation2 + $0x48] sm:$0xff]
        %v1104 = vld [vmem:[#allocation2 + $0x50] sm:$0xff]
        %v1105 = vld [vmem:[#allocation2 + $0x58] sm:$0xff]
        %v1106 = vld [vmem:[#allocation2 + $0x60] sm:$0xff]
        %v1107 = vld [vmem:[#allocation2 + $0x68] sm:$0xff]
        %v1108 = vld [vmem:[#allocation2 + $0x70] sm:$0xff]
        %v1109 = vld [vmem:[#allocation2 + $0x78] sm:$0xff]
        %v1110 = vld [vmem:[#allocation2 + $0x80] sm:$0xff]
        %v1111 = vld [vmem:[#allocation2 + $0x88] sm:$0xff]
        %v1112 = vld [vmem:[#allocation2 + $0x90] sm:$0xff]
        %v1113 = vld [vmem:[#allocation2 + $0x98] sm:$0xff]
        %v1114 = vld [vmem:[#allocation2 + $0xa0] sm:$0xff]
        %v1115 = vld [vmem:[#allocation2 + $0xa8] sm:$0xff]
        %v1116 = vld [vmem:[#allocation2 + $0xb0] sm:$0xff]
        %v1117 = vld [vmem:[#allocation2 + $0xb8] sm:$0xff]
        %v1118 = vld [vmem:[#allocation2 + $0xc0] sm:$0xff]
        %v1119 = vld [vmem:[#allocation2 + $0xc8] sm:$0xff]
        %v1120 = vld [vmem:[#allocation2 + $0xd0] sm:$0xff]
        %v1121 = vld [vmem:[#allocation2 + $0xd8] sm:$0xff]
        %v1122 = vld [vmem:[#allocation2 + $0xe0] sm:$0xff]
        %v1123 = vld [vmem:[#allocation2 + $0xe8] sm:$0xff]
        %v1124 = vld [vmem:[#allocation2 + $0xf0] sm:$0xff]
        %v1125 = vld [vmem:[#allocation2 + $0xf8] sm:$0xff]
        %v1126 = vld [vmem:[#allocation2 + $0x100] sm:$0xff]
        %v1127 = vld [vmem:[#allocation2 + $0x108] sm:$0xff]
        %v1128 = vld [vmem:[#allocation2 + $0x110] sm:$0xff]
        %v1129 = vld [vmem:[#allocation2 + $0x118] sm:$0xff]
        %v1130 = vld [vmem:[%s6] sm:$0xff]
        %v1131 = vld [vmem:[%s6 + $0x8] sm:$0xff]
        %1133 = vset.pattern.permute.xlu0 0
        %1134 = vperm.xlu0 %1133, %v1130
        %v1135 = vpop.permute.xlu0 %1134
        %1138 = vset.pattern.permute.xlu0 0
        %1139 = vperm.xlu0 %1138, %v1131
        %v1140 = vpop.permute.xlu0 %1139
        %v1142 = vsel %vm421, %v1091, 0
        %v1145 = vsel %vm421, %v1093, 0
        %1147 = vmatpush.msra.mxu0 %v1124
        %1148 = vmatpush.msra.mxu0 %v1122
        %1149 = vmatpush.msra.mxu0 %v1120
        %1150 = vmatpush.msra.mxu0 %v1118
        %1151 = vmatpush.msra.mxu0 %v1116
        %1152 = vmatpush.msra.mxu0 %v1114
        %1153 = vmatpush.msra.mxu0 %v1112
        %1154 = vmatpush.msra.mxu0 %v1110
        %1155 = vmatpush.msra.mxu0 %v1108
        %1156 = vmatpush.msra.mxu0 %v1106
        %1157 = vmatpush.msra.mxu0 %v1104
        %1158 = vmatpush.msra.mxu0 %v1102
        %1159 = vmatpush.msra.mxu0 %v1100
        %1160 = vmatpush.msra.mxu0 %v1098
        %1161 = vmatpush.msra.mxu0 %v1096
        %1162 = vmatpush.msra.mxu0 %v1094
        %1163 = vmatmul.f32.gmra.mxu0 %v1090
        %v1164 = vpop.f32.mrf.mxu0
        %v1165 = vadd.f32 %v1135, %v1164
        %1166 = vmatmul.f32.gmra.mxu0 %v1092
        %v1167 = vpop.f32.mrf.mxu0
        %1168 = vdwg.mxu0
        %1169 = vmatpush.msra.mxu0 0.0
        %1170 = vmatpush.msra.mxu0 0.0
        %1171 = vmatpush.msra.mxu0 0.0
        %1172 = vmatpush.msra.mxu0 0.0
        %1173 = vmatpush.msra.mxu0 0.0
        %1174 = vmatpush.msra.mxu0 0.0
        %1175 = vmatpush.msra.mxu0 0.0
        %1176 = vmatpush.msra.mxu0 0.0
        %1177 = vmatpush.msra.mxu0 0.0
        %1178 = vmatpush.msra.mxu0 0.0
        %1179 = vmatpush.msra.mxu0 0.0
        %1180 = vmatpush.msra.mxu0 0.0
        %1181 = vmatpush.msra.mxu0 0.0
        %1182 = vmatpush.msra.mxu0 0.0
        %1183 = vmatpush.msra.mxu0 %v1128
        %1184 = vmatpush.msra.mxu0 %v1126
        %1185 = vmatmul.f32.gmra.mxu0 %v1142
        %v1186 = vpop.f32.mrf.mxu0
        %v1187 = vadd.f32 %v1165, %v1186
        %1188 = vmatmul.f32.gmra.mxu0 %v1145
        %v1189 = vpop.f32.mrf.mxu0
        %1190 = vdwg.mxu0
        %1191 = vmatpush.msra.mxu0 %v1125
        %1192 = vmatpush.msra.mxu0 %v1123
        %1193 = vmatpush.msra.mxu0 %v1121
        %1194 = vmatpush.msra.mxu0 %v1119
        %1195 = vmatpush.msra.mxu0 %v1117
        %1196 = vmatpush.msra.mxu0 %v1115
        %1197 = vmatpush.msra.mxu0 %v1113
        %1198 = vmatpush.msra.mxu0 %v1111
        %1199 = vmatpush.msra.mxu0 %v1109
        %1200 = vmatpush.msra.mxu0 %v1107
        %1201 = vmatpush.msra.mxu0 %v1105
        %1202 = vmatpush.msra.mxu0 %v1103
        %1203 = vmatpush.msra.mxu0 %v1101
        %1204 = vmatpush.msra.mxu0 %v1099
        %1205 = vmatpush.msra.mxu0 %v1097
        %1206 = vmatpush.msra.mxu0 %v1095
        %1207 = vmatmul.f32.gmra.mxu0 %v1090
        %v1208 = vpop.f32.mrf.mxu0
        %v1209 = vadd.f32 %v1135, %v1208
        %1210 = vmatmul.f32.gmra.mxu0 %v1092
        %v1211 = vpop.f32.mrf.mxu0
        %1212 = vdwg.mxu0
        %1213 = vmatpush.msra.mxu0 0.0
        %1214 = vmatpush.msra.mxu0 0.0
        %1215 = vmatpush.msra.mxu0 0.0
        %1216 = vmatpush.msra.mxu0 0.0
        %1217 = vmatpush.msra.mxu0 0.0
        %1218 = vmatpush.msra.mxu0 0.0
        %1219 = vmatpush.msra.mxu0 0.0
        %1220 = vmatpush.msra.mxu0 0.0
        %1221 = vmatpush.msra.mxu0 0.0
        %1222 = vmatpush.msra.mxu0 0.0
        %1223 = vmatpush.msra.mxu0 0.0
        %1224 = vmatpush.msra.mxu0 0.0
        %1225 = vmatpush.msra.mxu0 0.0
        %1226 = vmatpush.msra.mxu0 0.0
        %1227 = vmatpush.msra.mxu0 %v1129
        %1228 = vmatpush.msra.mxu0 %v1127
        %1229 = vmatmul.f32.gmra.mxu0 %v1142
        %v1230 = vpop.f32.mrf.mxu0
        %v1231 = vadd.f32 %v1209, %v1230
        %1232 = vmatmul.f32.gmra.mxu0 %v1145
        %v1233 = vpop.f32.mrf.mxu0
        %1234 = vdwg.mxu0
        %v1235 = vmax.f32 %v1187, 0.0
        %v1236 = vmax.f32 %v1231, 0.0
        %v1237 = vld [vmem:[%s402] sm:$0xff]
        %v1238 = vld [vmem:[%s402 + $0x8] sm:$0xff]
        %v1239 = vadd.f32 %v1237, %v1235
        %v1240 = vadd.f32 %v1238, %v1236
        %1241 = vst [vmem:[%s402] sm:$0xff] %v1239
        %1242 = vst [vmem:[%s402 + $0x8] sm:$0xff] %v1240
        %s1243 = sand.u32 %s230, 1
        %s1244 = scalar_lea.sflag [#allocation5], %s1243
        %s1245 = sand.u32 %s230, 1
        %s1246 = smul.addr %s1245, 16
        %s1247 = scalar_lea.vmem [#allocation11], %s1246
        // Predicated region
        $region73: #{tpu_custom_call.1} parent=55 // pred_check
          %p1248 = pneg %p240
        $region74: #{tpu_custom_call.1} parent=55 // pred_check_branch
          %1250 = sbr.rel (%p1248) target = $region76
        $region75: #{tpu_custom_call.1} parent=55 // pred_region
          %1252 = vsyncadd %s1244, 0
          %s1253 = smul.addr %s28, 2
          %s1254 = smul.addr %s1253, 8
          %s1255 = scalar_lea.hbm %s9, %s1254
          %s1257 = sshll.u32 %s1247, 4
          %s1258 = int_to_ptr.vmem [resolvable:$true] %s1257
          %s1259 = sshll.u32 %s1255, 4
          %s1260 = int_to_ptr.hbm [resolvable:$true] %s1259
          %1262 = dma.vmem_to_hbm [thread:$0]  %s1258, 256, %s1260, %s1244
        $region76: #{tpu_custom_call.1} parent=55 // pred_fallthru
          _
      $region56: #{tpu_custom_call.1} parent=5 // pred_fallthru
        _
      %p1263 = scmp.le.s32.totalorder 2, %s23
      // Predicated region
      $region77: #{tpu_custom_call.1} parent=5 // pred_check
        %p1264 = pneg %p1263
      $region78: #{tpu_custom_call.1} parent=5 // pred_check_branch
        %1266 = sbr.rel (%p1264) target = $region80
      $region79: #{tpu_custom_call.1} parent=5 // pred_region
        %s1267 = ssub.s32 %s23, 2
        // Predicated region
        $region81: #{tpu_custom_call.1} parent=79 // pred_check
          %p1268 = pneg %p246
        $region82: #{tpu_custom_call.1} parent=79 // pred_check_branch
          %1270 = sbr.rel (%p1268) target = $region84
        $region83: #{tpu_custom_call.1} parent=79 // pred_region
          %s1271 = sand.u32 %s231, 1
          %s1272 = scalar_lea.sflag [#allocation5], %s1271
          %s1273 = sand.u32 %s231, 1
          %s1274 = smul.addr %s1273, 16
          %s1275 = scalar_lea.vmem [#allocation11], %s1274
          %1277 = dma.done %s1272, 256
        $region84: #{tpu_custom_call.1} parent=79 // pred_fallthru
          _
      $region80: #{tpu_custom_call.1} parent=5 // pred_fallthru
        _
    $region6: #{tpu_custom_call.1} parent=1 // loop_footer
      %s27 = sadd.s32 1, %s23
    $region7: #{tpu_custom_call.1} parent=1 // loop_footer_branch
      %22 = sbr.rel target = $region3
    $region8: #{tpu_custom_call.1} parent=1 // loop_exit
      _
    %1278 = vsyncpa [#allocation4], 1
    %s1279 = scalar_lea.sflag [#allocation4], 1
    %1280 = vsyncpa %s1279, 1
    %1281 = vsyncpa [#allocation7], 1
    %1282 = vsyncpa [#allocation10], 1
    %1283 = vsyncpa [#allocation5], 1
    %s1284 = scalar_lea.sflag [#allocation5], 1
    %1285 = vsyncpa %s1284, 1

</llo_original>
